<compile_context>
chip_gen: v5e
topology: v5e:2x2
jax: 0.10.0
libtpu: 0.0.40
codegen_flags: <defaults>
</compile_context>

<pallas_src>
import functools

import numpy as np
import jax
import jax.numpy as jnp
from jax.experimental import pallas as pl
from jax.experimental.pallas import tpu as pltpu


# ----------------------------------------------------------------------------
# Host-side constants
# ----------------------------------------------------------------------------
def _bilinear_matrix(in_size, out_size):
    """Row-stochastic interpolation matrix of nn.Upsample(bilinear, align_corners=True)."""
    A = np.zeros((out_size, in_size), dtype=np.float32)
    if out_size == 1 or in_size == 1:
        A[:, 0] = 1.0
        return A
    scale = (in_size - 1) / (out_size - 1)
    for i in range(out_size):
        src = i * scale
        i0 = min(int(np.floor(src)), in_size - 1)
        i1 = min(i0 + 1, in_size - 1)
        f = src - i0
        A[i, i0] += 1.0 - f
        A[i, i1] += f
    return A


def _tap_masks(H, W):
    """(9, H*W) 0/1 masks: tap (dh, dw) is valid at (h, w) iff (h+dh, w+dw) is
    in bounds.  Masking the rolled activations == Conv2d(padding=1) zero pad,
    and also kills any cross-image leakage when the batch is lane-folded."""
    hh = np.arange(H)[:, None]
    ww = np.arange(W)[None, :]
    m = np.zeros((9, H * W), dtype=np.float32)
    t = 0
    for dh in (-1, 0, 1):
        for dw in (-1, 0, 1):
            valid = ((hh + dh >= 0) & (hh + dh < H) &
                     (ww + dw >= 0) & (ww + dw < W))
            m[t] = valid.astype(np.float32).reshape(-1)
            t += 1
    return m


# ----------------------------------------------------------------------------
# Fused kernel: 1x1 mix + bilinear up + concat + (conv3x3+BN+LeakyReLU) x 2.
# Single grid step; batch folded into the lane axis (NS = N * H2 * W2).
# ----------------------------------------------------------------------------
def _upblock_kernel(x1_ref, x2_ref, w1_ref, bup_ref, wa_ref, wb_ref,
                    m_ref, p_ref, o_ref, slab_a_ref, slab_b_ref,
                    *, C2, CA, CB, W2, NS, SEG):
    CatC = 2 * C2
    # flat-spatial offset of each 3x3 tap (row-major h*W2 + w flattening)
    offs = [dh * W2 + dw for dh in (-1, 0, 1) for dw in (-1, 0, 1)]

    # ---- 1x1 conv (channel mix) + bilinear 2x upsample: two bf16 MXU dots ----
    mix = jnp.dot(w1_ref[...], x1_ref[...], preferred_element_type=jnp.float32)
    up1 = jnp.dot(mix.astype(jnp.bfloat16), bup_ref[...],
                  preferred_element_type=jnp.float32)
    # 1x1 bias hoisted past the upsample (exact: align_corners rows sum to 1)
    up1 = up1 + p_ref[0:C2, :]
    x2 = x2_ref[...]

    def fill_slab(slab_ref, pieces):
        # pieces: list of f32 (c, NS) arrays; concat order == conv input order.
        cs = [p.shape[0] for p in pieces]
        blk = sum(cs)
        for t, k in enumerate(offs):
            row = t * blk
            for x, c in zip(pieces, cs):
                sh = x if k == 0 else pltpu.roll(x, shift=(-k) % NS, axis=1)
                if t != 4:                      # center tap never out of bounds
                    sh = sh * m_ref[t:t + 1, :]
                slab_ref[row:row + c, :] = sh
                row += c

    # ---- conv A: concat + im2col built straight into the slab, one MXU dot ----
    fill_slab(slab_a_ref, [x2, up1])
    ya = jnp.dot(wa_ref[...], slab_a_ref[...].astype(jnp.bfloat16),
                 preferred_element_type=jnp.float32)
    ya = ya + p_ref[SEG:SEG + CA, :]            # conv bias + BN shift (scale in wa)
    ya = jnp.where(ya >= 0.0, ya, 0.01 * ya)    # LeakyReLU(0.01)
    # TODO(synk): Dropout is identity (inference mode).

    # ---- conv B ----
    fill_slab(slab_b_ref, [ya])
    yb = jnp.dot(wb_ref[...], slab_b_ref[...].astype(jnp.bfloat16),
                 preferred_element_type=jnp.float32)
    yb = yb + p_ref[2 * SEG:2 * SEG + CB, :]
    o_ref[...] = jnp.where(yb >= 0.0, yb, 0.01 * yb)


def upblock_fused_call(x1f, x2f, w1, b_up, wa, wb, masks, packed, *, W2):
    C1, NSin = x1f.shape
    C2, NS = x2f.shape
    CA, CB = wa.shape[0], wb.shape[0]
    CatC = 2 * C2
    SEG = packed.shape[0] // 3
    kernel = functools.partial(_upblock_kernel, C2=C2, CA=CA, CB=CB,
                               W2=W2, NS=NS, SEG=SEG)
    return pl.pallas_call(
        kernel,
        out_shape=jax.ShapeDtypeStruct((CB, NS), jnp.float32),
        grid=(1,),
        in_specs=[
            pl.BlockSpec((C1, NSin), lambda i: (0, 0)),      # x1 flat (bf16)
            pl.BlockSpec((C2, NS), lambda i: (0, 0)),        # x2 flat (f32)
            pl.BlockSpec((C2, C1), lambda i: (0, 0)),        # 1x1 weight (bf16)
            pl.BlockSpec((NSin, NS), lambda i: (0, 0)),      # kron(I_N, U^T) (bf16)
            pl.BlockSpec((CA, 9 * CatC), lambda i: (0, 0)),  # conv A weight*scale (bf16)
            pl.BlockSpec((CB, 9 * CA), lambda i: (0, 0)),    # conv B weight*scale (bf16)
            pl.BlockSpec((9, NS), lambda i: (0, 0)),         # tap masks (f32)
            pl.BlockSpec((3 * SEG, 1), lambda i: (0, 0)),    # packed b1/shift_a/shift_b
        ],
        out_specs=pl.BlockSpec((CB, NS), lambda i: (0, 0)),
        scratch_shapes=[
            pltpu.VMEM((9 * CatC, NS), jnp.float32),   # im2col slab, conv A
            pltpu.VMEM((9 * CA, NS), jnp.float32),     # im2col slab, conv B
        ],
        compiler_params=pltpu.CompilerParams(dimension_semantics=("arbitrary",)),
    )(x1f, x2f, w1, b_up, wa, wb, masks, packed)


# ----------------------------------------------------------------------------
# Parameter init (deterministic, synthetic) and UpBlock forward.
# ----------------------------------------------------------------------------
def init_upblock_params(key, in_ch1, in_ch2, out_ch):
    ks = jax.random.split(key, 10)
    cat_ch = 2 * in_ch2
    return {
        "w1x1": 0.1 * jax.random.normal(ks[0], (in_ch2, in_ch1), jnp.float32),
        "b1x1": 0.1 * jax.random.normal(ks[1], (in_ch2,), jnp.float32),
        "w_a": 0.1 * jax.random.normal(ks[2], (out_ch, cat_ch, 3, 3), jnp.float32),
        "b_a": 0.1 * jax.random.normal(ks[3], (out_ch,), jnp.float32),
        "g_a": 1.0 + 0.1 * jax.random.normal(ks[4], (out_ch,), jnp.float32),
        "be_a": 0.1 * jax.random.normal(ks[5], (out_ch,), jnp.float32),
        "m_a": 0.05 * jax.random.normal(ks[6], (out_ch,), jnp.float32),
        "v_a": 1.0 + 0.1 * jnp.abs(jax.random.normal(ks[7], (out_ch,), jnp.float32)),
        "w_b": 0.1 * jax.random.normal(ks[8], (out_ch, out_ch, 3, 3), jnp.float32),
        "b_b": 0.1 * jax.random.normal(ks[9], (out_ch,), jnp.float32),
        "g_b": jnp.ones((out_ch,), jnp.float32),
        "be_b": jnp.zeros((out_ch,), jnp.float32),
        "m_b": jnp.zeros((out_ch,), jnp.float32),
        "v_b": jnp.ones((out_ch,), jnp.float32),
    }


def _conv_w_mat(w_oihw):
    # OIHW -> (O, 9*I) with K index = (kh*3 + kw)*I + i, matching the slab order.
    O, I = w_oihw.shape[0], w_oihw.shape[1]
    return jnp.transpose(w_oihw, (0, 2, 3, 1)).reshape(O, 9 * I)


def upblock_forward(params, x1_nchw, x2_nchw):
    x1 = x1_nchw.astype(jnp.float32)
    x2 = x2_nchw.astype(jnp.float32)
    N, C1, H, W = x1.shape
    _, C2, H2, W2 = x2.shape
    assert (H2, W2) == (2 * H, 2 * W)
    Sin, S = H * W, H2 * W2
    eps = 1e-5

    # Host constants: block-diagonal bilinear upsample matrix and tap masks.
    A_h = _bilinear_matrix(H, H2)
    A_w = _bilinear_matrix(W, W2)
    U_T = np.kron(A_h, A_w).T                                   # (Sin, S)
    b_up = jnp.asarray(np.kron(np.eye(N, dtype=np.float32), U_T),
                       dtype=jnp.bfloat16)                      # (N*Sin, N*S)
    masks = jnp.asarray(np.tile(_tap_masks(H2, W2), (1, N)),
                        dtype=jnp.float32)                      # (9, N*S)

    # Batch-folded, lane-dense activations.
    x1f = jnp.transpose(x1, (1, 0, 2, 3)).reshape(C1, N * Sin).astype(jnp.bfloat16)
    x2f = jnp.transpose(x2, (1, 0, 2, 3)).reshape(C2, N * S)

    # Fold BN scale into the 3x3 weights; keep per-channel shifts.
    sa = params["g_a"] * jax.lax.rsqrt(params["v_a"] + eps)
    shift_a = sa * (params["b_a"] - params["m_a"]) + params["be_a"]
    wa = (_conv_w_mat(params["w_a"]) * sa[:, None]).astype(jnp.bfloat16)
    sb = params["g_b"] * jax.lax.rsqrt(params["v_b"] + eps)
    shift_b = sb * (params["b_b"] - params["m_b"]) + params["be_b"]
    wb = (_conv_w_mat(params["w_b"]) * sb[:, None]).astype(jnp.bfloat16)
    w1 = params["w1x1"].astype(jnp.bfloat16)

    CA, CB = wa.shape[0], wb.shape[0]
    SEG = ((max(C2, CA, CB) + 7) // 8) * 8
    packed = jnp.zeros((3 * SEG, 1), jnp.float32)
    packed = packed.at[0:C2, 0].set(params["b1x1"])
    packed = packed.at[SEG:SEG + CA, 0].set(shift_a)
    packed = packed.at[2 * SEG:2 * SEG + CB, 0].set(shift_b)

    outf = upblock_fused_call(x1f, x2f, w1, b_up, wa, wb, masks, packed, W2=W2)
    return outf.reshape(CB, N, H2, W2).transpose(1, 0, 2, 3)     # NCHW like PyTorch


# ----------------------------------------------------------------------------
# Pure-JAX f32 reference (inference semantics) for a sanity check.
# ----------------------------------------------------------------------------
def upblock_reference(params, x1, x2):
    x1 = x1.astype(jnp.float32)
    x2 = x2.astype(jnp.float32)
    N, C1, H, W = x1.shape
    H2, W2 = 2 * H, 2 * W
    mix = jnp.einsum("oc,nchw->nohw", params["w1x1"], x1) \
        + params["b1x1"][None, :, None, None]
    A_h = jnp.asarray(_bilinear_matrix(H, H2))
    A_w = jnp.asarray(_bilinear_matrix(W, W2))
    up = jnp.einsum("Hh,nchw,Ww->ncHW", A_h, mix, A_w)
    x = jnp.concatenate([x2, up], axis=1)

    def conv_bn_lrelu(x, w, b, g, be, m, v):
        y = jax.lax.conv_general_dilated(
            x, w, window_strides=(1, 1), padding="SAME",
            dimension_numbers=("NCHW", "OIHW", "NCHW")) + b[None, :, None, None]
        y = (y - m[None, :, None, None]) * jax.lax.rsqrt(v[None, :, None, None] + 1e-5)
        y = y * g[None, :, None, None] + be[None, :, None, None]
        return jnp.where(y >= 0, y, 0.01 * y)

    y = conv_bn_lrelu(x, params["w_a"], params["b_a"], params["g_a"],
                      params["be_a"], params["m_a"], params["v_a"])
    y = conv_bn_lrelu(y, params["w_b"], params["b_b"], params["g_b"],
                      params["be_b"], params["m_b"], params["v_b"])
    return y


if __name__ == "__main__":
    key = jax.random.PRNGKey(0)
    k_par, k_x1, k_x2 = jax.random.split(key, 3)

    # UpBlock(in_channels1=8, in_channels2=4, out_channels=8, dropout_p=0.1)
    in_ch1, in_ch2, out_ch = 8, 4, 8
    N, H, W = 2, 8, 8

    params = init_upblock_params(k_par, in_ch1, in_ch2, out_ch)
    x1 = jax.random.normal(k_x1, (N, in_ch1, H, W), jnp.float32)          # NCHW
    x2 = jax.random.normal(k_x2, (N, in_ch2, 2 * H, 2 * W), jnp.float32)  # NCHW

    out = upblock_forward(params, x1, x2)
    out = jax.block_until_ready(out)

    assert out.shape == (N, out_ch, 2 * H, 2 * W), out.shape
    assert bool(jnp.all(jnp.isfinite(out)))

    ref = upblock_reference(params, x1, x2)
    err = float(jnp.max(jnp.abs(out - ref)))
    assert err < 0.1, f"max abs error vs f32 reference too large: {err}"

    print("KERNEL_OK")
</pallas_src>

<mosaic_0001>
module attributes {stable_mosaic.version = 11 : i64} {
  func.func @_upblock_kernel(%arg0: i32, %arg1: memref<8x128xbf16, #tpu.memory_space<vmem>>, %arg2: memref<4x512xf32, #tpu.memory_space<vmem>>, %arg3: memref<4x8xbf16, #tpu.memory_space<vmem>>, %arg4: memref<128x512xbf16, #tpu.memory_space<vmem>>, %arg5: memref<8x72xbf16, #tpu.memory_space<vmem>>, %arg6: memref<8x72xbf16, #tpu.memory_space<vmem>>, %arg7: memref<9x512xf32, #tpu.memory_space<vmem>>, %arg8: memref<24x1xf32, #tpu.memory_space<vmem>>, %arg9: memref<8x512xf32, #tpu.memory_space<vmem>>, %arg10: memref<72x512xf32, #tpu.memory_space<vmem>>, %arg11: memref<72x512xf32, #tpu.memory_space<vmem>>) attributes {dimension_semantics = [#tpu.dimension_semantics<arbitrary>], iteration_bounds = array<i64: 1>, scalar_prefetch = 0 : i64, scratch_operands = 2 : i64, tpu.core_type = #tpu.core_type<tc>, window_params = [{pipeline_mode = #tpu.pipeline_mode<synchronous>, transform_indices = @transform_0, window_bounds = array<i64: 8, 128>}, {pipeline_mode = #tpu.pipeline_mode<synchronous>, transform_indices = @transform_1, window_bounds = array<i64: 4, 512>}, {pipeline_mode = #tpu.pipeline_mode<synchronous>, transform_indices = @transform_2, window_bounds = array<i64: 4, 8>}, {pipeline_mode = #tpu.pipeline_mode<synchronous>, transform_indices = @transform_3, window_bounds = array<i64: 128, 512>}, {pipeline_mode = #tpu.pipeline_mode<synchronous>, transform_indices = @transform_4, window_bounds = array<i64: 8, 72>}, {pipeline_mode = #tpu.pipeline_mode<synchronous>, transform_indices = @transform_5, window_bounds = array<i64: 8, 72>}, {pipeline_mode = #tpu.pipeline_mode<synchronous>, transform_indices = @transform_6, window_bounds = array<i64: 9, 512>}, {pipeline_mode = #tpu.pipeline_mode<synchronous>, transform_indices = @transform_7, window_bounds = array<i64: 24, 1>}, {pipeline_mode = #tpu.pipeline_mode<synchronous>, transform_indices = @transform_8, window_bounds = array<i64: 8, 512>}]} {
    %c0 = arith.constant 0 : index
    %c0_0 = arith.constant 0 : index
    %0 = vector.load %arg3[%c0, %c0_0] : memref<4x8xbf16, #tpu.memory_space<vmem>>, vector<4x8xbf16>
    %c0_1 = arith.constant 0 : index
    %c0_2 = arith.constant 0 : index
    %1 = vector.load %arg1[%c0_1, %c0_2] : memref<8x128xbf16, #tpu.memory_space<vmem>>, vector<8x128xbf16>
    %cst = arith.constant dense<0.000000e+00> : vector<4x128xf32>
    %2 = tpu.matmul %0, %1, %cst {dimension_numbers = #tpu.dot_dimension_numbers<[1], [0], [0], [1], [0, 0, 1, 1], [], []>} : vector<4x8xbf16>, vector<8x128xbf16>, vector<4x128xf32> -> vector<4x128xf32>
    %3 = arith.truncf %2 : vector<4x128xf32> to vector<4x128xbf16>
    %c0_3 = arith.constant 0 : index
    %c0_4 = arith.constant 0 : index
    %4 = vector.load %arg4[%c0_3, %c0_4] : memref<128x512xbf16, #tpu.memory_space<vmem>>, vector<128x512xbf16>
    %cst_5 = arith.constant dense<0.000000e+00> : vector<4x512xf32>
    %5 = tpu.matmul %3, %4, %cst_5 {dimension_numbers = #tpu.dot_dimension_numbers<[1], [0], [0], [1], [0, 0, 1, 1], [], []>} : vector<4x128xbf16>, vector<128x512xbf16>, vector<4x512xf32> -> vector<4x512xf32>
    %c0_6 = arith.constant 0 : index
    %c0_7 = arith.constant 0 : index
    %6 = vector.load %arg8[%c0_6, %c0_7] : memref<24x1xf32, #tpu.memory_space<vmem>>, vector<4x1xf32>
    %7 = vector.broadcast %6 : vector<4x1xf32> to vector<4x512xf32>
    %8 = arith.addf %5, %7 : vector<4x512xf32>
    %c0_8 = arith.constant 0 : index
    %c0_9 = arith.constant 0 : index
    %9 = vector.load %arg2[%c0_8, %c0_9] : memref<4x512xf32, #tpu.memory_space<vmem>>, vector<4x512xf32>
    %c17_i32 = arith.constant 17 : i32
    %10 = tpu.dynamic_rotate %9 by %c17_i32 dim 1 : vector<4x512xf32>, i32 -> vector<4x512xf32>
    %c0_10 = arith.constant 0 : index
    %c0_11 = arith.constant 0 : index
    %11 = vector.load %arg7[%c0_10, %c0_11] : memref<9x512xf32, #tpu.memory_space<vmem>>, vector<1x512xf32>
    %12 = vector.broadcast %11 : vector<1x512xf32> to vector<4x512xf32>
    %13 = arith.mulf %10, %12 : vector<4x512xf32>
    %c0_12 = arith.constant 0 : index
    %c0_13 = arith.constant 0 : index
    %14 = vector.load %arg10[%c0_12, %c0_13] : memref<72x512xf32, #tpu.memory_space<vmem>>, vector<4x512xf32>
    tpu.vector_store %arg10[%c0_12, %c0_13], %13 {strides = array<i32>} : memref<72x512xf32, #tpu.memory_space<vmem>>, vector<4x512xf32>,
    %c17_i32_14 = arith.constant 17 : i32
    %15 = tpu.dynamic_rotate %8 by %c17_i32_14 dim 1 : vector<4x512xf32>, i32 -> vector<4x512xf32>
    %c0_15 = arith.constant 0 : index
    %c0_16 = arith.constant 0 : index
    %16 = vector.load %arg7[%c0_15, %c0_16] : memref<9x512xf32, #tpu.memory_space<vmem>>, vector<1x512xf32>
    %17 = vector.broadcast %16 : vector<1x512xf32> to vector<4x512xf32>
    %18 = arith.mulf %15, %17 : vector<4x512xf32>
    %c4 = arith.constant 4 : index
    %c0_17 = arith.constant 0 : index
    %19 = vector.load %arg10[%c4, %c0_17] : memref<72x512xf32, #tpu.memory_space<vmem>>, vector<4x512xf32>
    tpu.vector_store %arg10[%c4, %c0_17], %18 {strides = array<i32>} : memref<72x512xf32, #tpu.memory_space<vmem>>, vector<4x512xf32>,
    %c16_i32 = arith.constant 16 : i32
    %20 = tpu.dynamic_rotate %9 by %c16_i32 dim 1 : vector<4x512xf32>, i32 -> vector<4x512xf32>
    %c1 = arith.constant 1 : index
    %c0_18 = arith.constant 0 : index
    %21 = vector.load %arg7[%c1, %c0_18] : memref<9x512xf32, #tpu.memory_space<vmem>>, vector<1x512xf32>
    %22 = vector.broadcast %21 : vector<1x512xf32> to vector<4x512xf32>
    %23 = arith.mulf %20, %22 : vector<4x512xf32>
    %c8 = arith.constant 8 : index
    %c0_19 = arith.constant 0 : index
    %24 = vector.load %arg10[%c8, %c0_19] : memref<72x512xf32, #tpu.memory_space<vmem>>, vector<4x512xf32>
    tpu.vector_store %arg10[%c8, %c0_19], %23 {strides = array<i32>} : memref<72x512xf32, #tpu.memory_space<vmem>>, vector<4x512xf32>,
    %c16_i32_20 = arith.constant 16 : i32
    %25 = tpu.dynamic_rotate %8 by %c16_i32_20 dim 1 : vector<4x512xf32>, i32 -> vector<4x512xf32>
    %c1_21 = arith.constant 1 : index
    %c0_22 = arith.constant 0 : index
    %26 = vector.load %arg7[%c1_21, %c0_22] : memref<9x512xf32, #tpu.memory_space<vmem>>, vector<1x512xf32>
    %27 = vector.broadcast %26 : vector<1x512xf32> to vector<4x512xf32>
    %28 = arith.mulf %25, %27 : vector<4x512xf32>
    %c12 = arith.constant 12 : index
    %c0_23 = arith.constant 0 : index
    %29 = vector.load %arg10[%c12, %c0_23] : memref<72x512xf32, #tpu.memory_space<vmem>>, vector<4x512xf32>
    tpu.vector_store %arg10[%c12, %c0_23], %28 {strides = array<i32>} : memref<72x512xf32, #tpu.memory_space<vmem>>, vector<4x512xf32>,
    %c15_i32 = arith.constant 15 : i32
    %30 = tpu.dynamic_rotate %9 by %c15_i32 dim 1 : vector<4x512xf32>, i32 -> vector<4x512xf32>
    %c2 = arith.constant 2 : index
    %c0_24 = arith.constant 0 : index
    %31 = vector.load %arg7[%c2, %c0_24] : memref<9x512xf32, #tpu.memory_space<vmem>>, vector<1x512xf32>
    %32 = vector.broadcast %31 : vector<1x512xf32> to vector<4x512xf32>
    %33 = arith.mulf %30, %32 : vector<4x512xf32>
    %c16 = arith.constant 16 : index
    %c0_25 = arith.constant 0 : index
    %34 = vector.load %arg10[%c16, %c0_25] : memref<72x512xf32, #tpu.memory_space<vmem>>, vector<4x512xf32>
    tpu.vector_store %arg10[%c16, %c0_25], %33 {strides = array<i32>} : memref<72x512xf32, #tpu.memory_space<vmem>>, vector<4x512xf32>,
    %c15_i32_26 = arith.constant 15 : i32
    %35 = tpu.dynamic_rotate %8 by %c15_i32_26 dim 1 : vector<4x512xf32>, i32 -> vector<4x512xf32>
    %c2_27 = arith.constant 2 : index
    %c0_28 = arith.constant 0 : index
    %36 = vector.load %arg7[%c2_27, %c0_28] : memref<9x512xf32, #tpu.memory_space<vmem>>, vector<1x512xf32>
    %37 = vector.broadcast %36 : vector<1x512xf32> to vector<4x512xf32>
    %38 = arith.mulf %35, %37 : vector<4x512xf32>
    %c20 = arith.constant 20 : index
    %c0_29 = arith.constant 0 : index
    %39 = vector.load %arg10[%c20, %c0_29] : memref<72x512xf32, #tpu.memory_space<vmem>>, vector<4x512xf32>
    tpu.vector_store %arg10[%c20, %c0_29], %38 {strides = array<i32>} : memref<72x512xf32, #tpu.memory_space<vmem>>, vector<4x512xf32>,
    %c1_i32 = arith.constant 1 : i32
    %40 = tpu.dynamic_rotate %9 by %c1_i32 dim 1 : vector<4x512xf32>, i32 -> vector<4x512xf32>
    %c3 = arith.constant 3 : index
    %c0_30 = arith.constant 0 : index
    %41 = vector.load %arg7[%c3, %c0_30] : memref<9x512xf32, #tpu.memory_space<vmem>>, vector<1x512xf32>
    %42 = vector.broadcast %41 : vector<1x512xf32> to vector<4x512xf32>
    %43 = arith.mulf %40, %42 : vector<4x512xf32>
    %c24 = arith.constant 24 : index
    %c0_31 = arith.constant 0 : index
    %44 = vector.load %arg10[%c24, %c0_31] : memref<72x512xf32, #tpu.memory_space<vmem>>, vector<4x512xf32>
    tpu.vector_store %arg10[%c24, %c0_31], %43 {strides = array<i32>} : memref<72x512xf32, #tpu.memory_space<vmem>>, vector<4x512xf32>,
    %c1_i32_32 = arith.constant 1 : i32
    %45 = tpu.dynamic_rotate %8 by %c1_i32_32 dim 1 : vector<4x512xf32>, i32 -> vector<4x512xf32>
    %c3_33 = arith.constant 3 : index
    %c0_34 = arith.constant 0 : index
    %46 = vector.load %arg7[%c3_33, %c0_34] : memref<9x512xf32, #tpu.memory_space<vmem>>, vector<1x512xf32>
    %47 = vector.broadcast %46 : vector<1x512xf32> to vector<4x512xf32>
    %48 = arith.mulf %45, %47 : vector<4x512xf32>
    %c28 = arith.constant 28 : index
    %c0_35 = arith.constant 0 : index
    %49 = vector.load %arg10[%c28, %c0_35] : memref<72x512xf32, #tpu.memory_space<vmem>>, vector<4x512xf32>
    tpu.vector_store %arg10[%c28, %c0_35], %48 {strides = array<i32>} : memref<72x512xf32, #tpu.memory_space<vmem>>, vector<4x512xf32>,
    %c32 = arith.constant 32 : index
    %c0_36 = arith.constant 0 : index
    %50 = vector.load %arg10[%c32, %c0_36] : memref<72x512xf32, #tpu.memory_space<vmem>>, vector<4x512xf32>
    tpu.vector_store %arg10[%c32, %c0_36], %9 {strides = array<i32>} : memref<72x512xf32, #tpu.memory_space<vmem>>, vector<4x512xf32>,
    %c36 = arith.constant 36 : index
    %c0_37 = arith.constant 0 : index
    %51 = vector.load %arg10[%c36, %c0_37] : memref<72x512xf32, #tpu.memory_space<vmem>>, vector<4x512xf32>
    tpu.vector_store %arg10[%c36, %c0_37], %8 {strides = array<i32>} : memref<72x512xf32, #tpu.memory_space<vmem>>, vector<4x512xf32>,
    %c511_i32 = arith.constant 511 : i32
    %52 = tpu.dynamic_rotate %9 by %c511_i32 dim 1 : vector<4x512xf32>, i32 -> vector<4x512xf32>
    %c5 = arith.constant 5 : index
    %c0_38 = arith.constant 0 : index
    %53 = vector.load %arg7[%c5, %c0_38] : memref<9x512xf32, #tpu.memory_space<vmem>>, vector<1x512xf32>
    %54 = vector.broadcast %53 : vector<1x512xf32> to vector<4x512xf32>
    %55 = arith.mulf %52, %54 : vector<4x512xf32>
    %c40 = arith.constant 40 : index
    %c0_39 = arith.constant 0 : index
    %56 = vector.load %arg10[%c40, %c0_39] : memref<72x512xf32, #tpu.memory_space<vmem>>, vector<4x512xf32>
    tpu.vector_store %arg10[%c40, %c0_39], %55 {strides = array<i32>} : memref<72x512xf32, #tpu.memory_space<vmem>>, vector<4x512xf32>,
    %c511_i32_40 = arith.constant 511 : i32
    %57 = tpu.dynamic_rotate %8 by %c511_i32_40 dim 1 : vector<4x512xf32>, i32 -> vector<4x512xf32>
    %c5_41 = arith.constant 5 : index
    %c0_42 = arith.constant 0 : index
    %58 = vector.load %arg7[%c5_41, %c0_42] : memref<9x512xf32, #tpu.memory_space<vmem>>, vector<1x512xf32>
    %59 = vector.broadcast %58 : vector<1x512xf32> to vector<4x512xf32>
    %60 = arith.mulf %57, %59 : vector<4x512xf32>
    %c44 = arith.constant 44 : index
    %c0_43 = arith.constant 0 : index
    %61 = vector.load %arg10[%c44, %c0_43] : memref<72x512xf32, #tpu.memory_space<vmem>>, vector<4x512xf32>
    tpu.vector_store %arg10[%c44, %c0_43], %60 {strides = array<i32>} : memref<72x512xf32, #tpu.memory_space<vmem>>, vector<4x512xf32>,
    %c497_i32 = arith.constant 497 : i32
    %62 = tpu.dynamic_rotate %9 by %c497_i32 dim 1 : vector<4x512xf32>, i32 -> vector<4x512xf32>
    %c6 = arith.constant 6 : index
    %c0_44 = arith.constant 0 : index
    %63 = vector.load %arg7[%c6, %c0_44] : memref<9x512xf32, #tpu.memory_space<vmem>>, vector<1x512xf32>
    %64 = vector.broadcast %63 : vector<1x512xf32> to vector<4x512xf32>
    %65 = arith.mulf %62, %64 : vector<4x512xf32>
    %c48 = arith.constant 48 : index
    %c0_45 = arith.constant 0 : index
    %66 = vector.load %arg10[%c48, %c0_45] : memref<72x512xf32, #tpu.memory_space<vmem>>, vector<4x512xf32>
    tpu.vector_store %arg10[%c48, %c0_45], %65 {strides = array<i32>} : memref<72x512xf32, #tpu.memory_space<vmem>>, vector<4x512xf32>,
    %c497_i32_46 = arith.constant 497 : i32
    %67 = tpu.dynamic_rotate %8 by %c497_i32_46 dim 1 : vector<4x512xf32>, i32 -> vector<4x512xf32>
    %c6_47 = arith.constant 6 : index
    %c0_48 = arith.constant 0 : index
    %68 = vector.load %arg7[%c6_47, %c0_48] : memref<9x512xf32, #tpu.memory_space<vmem>>, vector<1x512xf32>
    %69 = vector.broadcast %68 : vector<1x512xf32> to vector<4x512xf32>
    %70 = arith.mulf %67, %69 : vector<4x512xf32>
    %c52 = arith.constant 52 : index
    %c0_49 = arith.constant 0 : index
    %71 = vector.load %arg10[%c52, %c0_49] : memref<72x512xf32, #tpu.memory_space<vmem>>, vector<4x512xf32>
    tpu.vector_store %arg10[%c52, %c0_49], %70 {strides = array<i32>} : memref<72x512xf32, #tpu.memory_space<vmem>>, vector<4x512xf32>,
    %c496_i32 = arith.constant 496 : i32
    %72 = tpu.dynamic_rotate %9 by %c496_i32 dim 1 : vector<4x512xf32>, i32 -> vector<4x512xf32>
    %c7 = arith.constant 7 : index
    %c0_50 = arith.constant 0 : index
    %73 = vector.load %arg7[%c7, %c0_50] : memref<9x512xf32, #tpu.memory_space<vmem>>, vector<1x512xf32>
    %74 = vector.broadcast %73 : vector<1x512xf32> to vector<4x512xf32>
    %75 = arith.mulf %72, %74 : vector<4x512xf32>
    %c56 = arith.constant 56 : index
    %c0_51 = arith.constant 0 : index
    %76 = vector.load %arg10[%c56, %c0_51] : memref<72x512xf32, #tpu.memory_space<vmem>>, vector<4x512xf32>
    tpu.vector_store %arg10[%c56, %c0_51], %75 {strides = array<i32>} : memref<72x512xf32, #tpu.memory_space<vmem>>, vector<4x512xf32>,
    %c496_i32_52 = arith.constant 496 : i32
    %77 = tpu.dynamic_rotate %8 by %c496_i32_52 dim 1 : vector<4x512xf32>, i32 -> vector<4x512xf32>
    %c7_53 = arith.constant 7 : index
    %c0_54 = arith.constant 0 : index
    %78 = vector.load %arg7[%c7_53, %c0_54] : memref<9x512xf32, #tpu.memory_space<vmem>>, vector<1x512xf32>
    %79 = vector.broadcast %78 : vector<1x512xf32> to vector<4x512xf32>
    %80 = arith.mulf %77, %79 : vector<4x512xf32>
    %c60 = arith.constant 60 : index
    %c0_55 = arith.constant 0 : index
    %81 = vector.load %arg10[%c60, %c0_55] : memref<72x512xf32, #tpu.memory_space<vmem>>, vector<4x512xf32>
    tpu.vector_store %arg10[%c60, %c0_55], %80 {strides = array<i32>} : memref<72x512xf32, #tpu.memory_space<vmem>>, vector<4x512xf32>,
    %c495_i32 = arith.constant 495 : i32
    %82 = tpu.dynamic_rotate %9 by %c495_i32 dim 1 : vector<4x512xf32>, i32 -> vector<4x512xf32>
    %c8_56 = arith.constant 8 : index
    %c0_57 = arith.constant 0 : index
    %83 = vector.load %arg7[%c8_56, %c0_57] : memref<9x512xf32, #tpu.memory_space<vmem>>, vector<1x512xf32>
    %84 = vector.broadcast %83 : vector<1x512xf32> to vector<4x512xf32>
    %85 = arith.mulf %82, %84 : vector<4x512xf32>
    %c64 = arith.constant 64 : index
    %c0_58 = arith.constant 0 : index
    %86 = vector.load %arg10[%c64, %c0_58] : memref<72x512xf32, #tpu.memory_space<vmem>>, vector<4x512xf32>
    tpu.vector_store %arg10[%c64, %c0_58], %85 {strides = array<i32>} : memref<72x512xf32, #tpu.memory_space<vmem>>, vector<4x512xf32>,
    %c495_i32_59 = arith.constant 495 : i32
    %87 = tpu.dynamic_rotate %8 by %c495_i32_59 dim 1 : vector<4x512xf32>, i32 -> vector<4x512xf32>
    %c8_60 = arith.constant 8 : index
    %c0_61 = arith.constant 0 : index
    %88 = vector.load %arg7[%c8_60, %c0_61] : memref<9x512xf32, #tpu.memory_space<vmem>>, vector<1x512xf32>
    %89 = vector.broadcast %88 : vector<1x512xf32> to vector<4x512xf32>
    %90 = arith.mulf %87, %89 : vector<4x512xf32>
    %c68 = arith.constant 68 : index
    %c0_62 = arith.constant 0 : index
    %91 = vector.load %arg10[%c68, %c0_62] : memref<72x512xf32, #tpu.memory_space<vmem>>, vector<4x512xf32>
    tpu.vector_store %arg10[%c68, %c0_62], %90 {strides = array<i32>} : memref<72x512xf32, #tpu.memory_space<vmem>>, vector<4x512xf32>,
    %c0_63 = arith.constant 0 : index
    %c0_64 = arith.constant 0 : index
    %92 = vector.load %arg5[%c0_63, %c0_64] : memref<8x72xbf16, #tpu.memory_space<vmem>>, vector<8x72xbf16>
    %c0_65 = arith.constant 0 : index
    %c0_66 = arith.constant 0 : index
    %93 = vector.load %arg10[%c0_65, %c0_66] : memref<72x512xf32, #tpu.memory_space<vmem>>, vector<72x512xf32>
    %94 = arith.truncf %93 : vector<72x512xf32> to vector<72x512xbf16>
    %cst_67 = arith.constant dense<0.000000e+00> : vector<8x512xf32>
    %95 = tpu.matmul %92, %94, %cst_67 {dimension_numbers = #tpu.dot_dimension_numbers<[1], [0], [0], [1], [0, 0, 1, 1], [], []>} : vector<8x72xbf16>, vector<72x512xbf16>, vector<8x512xf32> -> vector<8x512xf32>
    %c8_68 = arith.constant 8 : index
    %c0_69 = arith.constant 0 : index
    %96 = vector.load %arg8[%c8_68, %c0_69] : memref<24x1xf32, #tpu.memory_space<vmem>>, vector<8x1xf32>
    %97 = vector.broadcast %96 : vector<8x1xf32> to vector<8x512xf32>
    %98 = arith.addf %95, %97 : vector<8x512xf32>
    %cst_70 = arith.constant 0.000000e+00 : f32
    %99 = vector.broadcast %cst_70 : f32 to vector<8x512xf32>
    %100 = arith.cmpf oge, %98, %99 : vector<8x512xf32>
    %cst_71 = arith.constant 0.00999999977 : f32
    %101 = vector.broadcast %cst_71 : f32 to vector<8x512xf32>
    %102 = arith.mulf %101, %98 : vector<8x512xf32>
    %103 = arith.select %100, %98, %102 : vector<8x512xi1>, vector<8x512xf32>
    %c17_i32_72 = arith.constant 17 : i32
    %104 = tpu.dynamic_rotate %103 by %c17_i32_72 dim 1 : vector<8x512xf32>, i32 -> vector<8x512xf32>
    %c0_73 = arith.constant 0 : index
    %c0_74 = arith.constant 0 : index
    %105 = vector.load %arg7[%c0_73, %c0_74] : memref<9x512xf32, #tpu.memory_space<vmem>>, vector<1x512xf32>
    %106 = vector.broadcast %105 : vector<1x512xf32> to vector<8x512xf32>
    %107 = arith.mulf %104, %106 : vector<8x512xf32>
    %c0_75 = arith.constant 0 : index
    %c0_76 = arith.constant 0 : index
    %108 = vector.load %arg11[%c0_75, %c0_76] : memref<72x512xf32, #tpu.memory_space<vmem>>, vector<8x512xf32>
    tpu.vector_store %arg11[%c0_75, %c0_76], %107 {strides = array<i32>} : memref<72x512xf32, #tpu.memory_space<vmem>>, vector<8x512xf32>,
    %c16_i32_77 = arith.constant 16 : i32
    %109 = tpu.dynamic_rotate %103 by %c16_i32_77 dim 1 : vector<8x512xf32>, i32 -> vector<8x512xf32>
    %c1_78 = arith.constant 1 : index
    %c0_79 = arith.constant 0 : index
    %110 = vector.load %arg7[%c1_78, %c0_79] : memref<9x512xf32, #tpu.memory_space<vmem>>, vector<1x512xf32>
    %111 = vector.broadcast %110 : vector<1x512xf32> to vector<8x512xf32>
    %112 = arith.mulf %109, %111 : vector<8x512xf32>
    %c8_80 = arith.constant 8 : index
    %c0_81 = arith.constant 0 : index
    %113 = vector.load %arg11[%c8_80, %c0_81] : memref<72x512xf32, #tpu.memory_space<vmem>>, vector<8x512xf32>
    tpu.vector_store %arg11[%c8_80, %c0_81], %112 {strides = array<i32>} : memref<72x512xf32, #tpu.memory_space<vmem>>, vector<8x512xf32>,
    %c15_i32_82 = arith.constant 15 : i32
    %114 = tpu.dynamic_rotate %103 by %c15_i32_82 dim 1 : vector<8x512xf32>, i32 -> vector<8x512xf32>
    %c2_83 = arith.constant 2 : index
    %c0_84 = arith.constant 0 : index
    %115 = vector.load %arg7[%c2_83, %c0_84] : memref<9x512xf32, #tpu.memory_space<vmem>>, vector<1x512xf32>
    %116 = vector.broadcast %115 : vector<1x512xf32> to vector<8x512xf32>
    %117 = arith.mulf %114, %116 : vector<8x512xf32>
    %c16_85 = arith.constant 16 : index
    %c0_86 = arith.constant 0 : index
    %118 = vector.load %arg11[%c16_85, %c0_86] : memref<72x512xf32, #tpu.memory_space<vmem>>, vector<8x512xf32>
    tpu.vector_store %arg11[%c16_85, %c0_86], %117 {strides = array<i32>} : memref<72x512xf32, #tpu.memory_space<vmem>>, vector<8x512xf32>,
    %c1_i32_87 = arith.constant 1 : i32
    %119 = tpu.dynamic_rotate %103 by %c1_i32_87 dim 1 : vector<8x512xf32>, i32 -> vector<8x512xf32>
    %c3_88 = arith.constant 3 : index
    %c0_89 = arith.constant 0 : index
    %120 = vector.load %arg7[%c3_88, %c0_89] : memref<9x512xf32, #tpu.memory_space<vmem>>, vector<1x512xf32>
    %121 = vector.broadcast %120 : vector<1x512xf32> to vector<8x512xf32>
    %122 = arith.mulf %119, %121 : vector<8x512xf32>
    %c24_90 = arith.constant 24 : index
    %c0_91 = arith.constant 0 : index
    %123 = vector.load %arg11[%c24_90, %c0_91] : memref<72x512xf32, #tpu.memory_space<vmem>>, vector<8x512xf32>
    tpu.vector_store %arg11[%c24_90, %c0_91], %122 {strides = array<i32>} : memref<72x512xf32, #tpu.memory_space<vmem>>, vector<8x512xf32>,
    %c32_92 = arith.constant 32 : index
    %c0_93 = arith.constant 0 : index
    %124 = vector.load %arg11[%c32_92, %c0_93] : memref<72x512xf32, #tpu.memory_space<vmem>>, vector<8x512xf32>
    tpu.vector_store %arg11[%c32_92, %c0_93], %103 {strides = array<i32>} : memref<72x512xf32, #tpu.memory_space<vmem>>, vector<8x512xf32>,
    %c511_i32_94 = arith.constant 511 : i32
    %125 = tpu.dynamic_rotate %103 by %c511_i32_94 dim 1 : vector<8x512xf32>, i32 -> vector<8x512xf32>
    %c5_95 = arith.constant 5 : index
    %c0_96 = arith.constant 0 : index
    %126 = vector.load %arg7[%c5_95, %c0_96] : memref<9x512xf32, #tpu.memory_space<vmem>>, vector<1x512xf32>
    %127 = vector.broadcast %126 : vector<1x512xf32> to vector<8x512xf32>
    %128 = arith.mulf %125, %127 : vector<8x512xf32>
    %c40_97 = arith.constant 40 : index
    %c0_98 = arith.constant 0 : index
    %129 = vector.load %arg11[%c40_97, %c0_98] : memref<72x512xf32, #tpu.memory_space<vmem>>, vector<8x512xf32>
    tpu.vector_store %arg11[%c40_97, %c0_98], %128 {strides = array<i32>} : memref<72x512xf32, #tpu.memory_space<vmem>>, vector<8x512xf32>,
    %c497_i32_99 = arith.constant 497 : i32
    %130 = tpu.dynamic_rotate %103 by %c497_i32_99 dim 1 : vector<8x512xf32>, i32 -> vector<8x512xf32>
    %c6_100 = arith.constant 6 : index
    %c0_101 = arith.constant 0 : index
    %131 = vector.load %arg7[%c6_100, %c0_101] : memref<9x512xf32, #tpu.memory_space<vmem>>, vector<1x512xf32>
    %132 = vector.broadcast %131 : vector<1x512xf32> to vector<8x512xf32>
    %133 = arith.mulf %130, %132 : vector<8x512xf32>
    %c48_102 = arith.constant 48 : index
    %c0_103 = arith.constant 0 : index
    %134 = vector.load %arg11[%c48_102, %c0_103] : memref<72x512xf32, #tpu.memory_space<vmem>>, vector<8x512xf32>
    tpu.vector_store %arg11[%c48_102, %c0_103], %133 {strides = array<i32>} : memref<72x512xf32, #tpu.memory_space<vmem>>, vector<8x512xf32>,
    %c496_i32_104 = arith.constant 496 : i32
    %135 = tpu.dynamic_rotate %103 by %c496_i32_104 dim 1 : vector<8x512xf32>, i32 -> vector<8x512xf32>
    %c7_105 = arith.constant 7 : index
    %c0_106 = arith.constant 0 : index
    %136 = vector.load %arg7[%c7_105, %c0_106] : memref<9x512xf32, #tpu.memory_space<vmem>>, vector<1x512xf32>
    %137 = vector.broadcast %136 : vector<1x512xf32> to vector<8x512xf32>
    %138 = arith.mulf %135, %137 : vector<8x512xf32>
    %c56_107 = arith.constant 56 : index
    %c0_108 = arith.constant 0 : index
    %139 = vector.load %arg11[%c56_107, %c0_108] : memref<72x512xf32, #tpu.memory_space<vmem>>, vector<8x512xf32>
    tpu.vector_store %arg11[%c56_107, %c0_108], %138 {strides = array<i32>} : memref<72x512xf32, #tpu.memory_space<vmem>>, vector<8x512xf32>,
    %c495_i32_109 = arith.constant 495 : i32
    %140 = tpu.dynamic_rotate %103 by %c495_i32_109 dim 1 : vector<8x512xf32>, i32 -> vector<8x512xf32>
    %c8_110 = arith.constant 8 : index
    %c0_111 = arith.constant 0 : index
    %141 = vector.load %arg7[%c8_110, %c0_111] : memref<9x512xf32, #tpu.memory_space<vmem>>, vector<1x512xf32>
    %142 = vector.broadcast %141 : vector<1x512xf32> to vector<8x512xf32>
    %143 = arith.mulf %140, %142 : vector<8x512xf32>
    %c64_112 = arith.constant 64 : index
    %c0_113 = arith.constant 0 : index
    %144 = vector.load %arg11[%c64_112, %c0_113] : memref<72x512xf32, #tpu.memory_space<vmem>>, vector<8x512xf32>
    tpu.vector_store %arg11[%c64_112, %c0_113], %143 {strides = array<i32>} : memref<72x512xf32, #tpu.memory_space<vmem>>, vector<8x512xf32>,
    %c0_114 = arith.constant 0 : index
    %c0_115 = arith.constant 0 : index
    %145 = vector.load %arg6[%c0_114, %c0_115] : memref<8x72xbf16, #tpu.memory_space<vmem>>, vector<8x72xbf16>
    %c0_116 = arith.constant 0 : index
    %c0_117 = arith.constant 0 : index
    %146 = vector.load %arg11[%c0_116, %c0_117] : memref<72x512xf32, #tpu.memory_space<vmem>>, vector<72x512xf32>
    %147 = arith.truncf %146 : vector<72x512xf32> to vector<72x512xbf16>
    %cst_118 = arith.constant dense<0.000000e+00> : vector<8x512xf32>
    %148 = tpu.matmul %145, %147, %cst_118 {dimension_numbers = #tpu.dot_dimension_numbers<[1], [0], [0], [1], [0, 0, 1, 1], [], []>} : vector<8x72xbf16>, vector<72x512xbf16>, vector<8x512xf32> -> vector<8x512xf32>
    %c16_119 = arith.constant 16 : index
    %c0_120 = arith.constant 0 : index
    %149 = vector.load %arg8[%c16_119, %c0_120] : memref<24x1xf32, #tpu.memory_space<vmem>>, vector<8x1xf32>
    %150 = vector.broadcast %149 : vector<8x1xf32> to vector<8x512xf32>
    %151 = arith.addf %148, %150 : vector<8x512xf32>
    %cst_121 = arith.constant 0.000000e+00 : f32
    %152 = vector.broadcast %cst_121 : f32 to vector<8x512xf32>
    %153 = arith.cmpf oge, %151, %152 : vector<8x512xf32>
    %cst_122 = arith.constant 0.00999999977 : f32
    %154 = vector.broadcast %cst_122 : f32 to vector<8x512xf32>
    %155 = arith.mulf %154, %151 : vector<8x512xf32>
    %156 = arith.select %153, %151, %155 : vector<8x512xi1>, vector<8x512xf32>
    %c0_123 = arith.constant 0 : index
    %c0_124 = arith.constant 0 : index
    %157 = vector.load %arg9[%c0_123, %c0_124] : memref<8x512xf32, #tpu.memory_space<vmem>>, vector<8x512xf32>
    tpu.vector_store %arg9[%c0_123, %c0_124], %156 {strides = array<i32>} : memref<8x512xf32, #tpu.memory_space<vmem>>, vector<8x512xf32>,
    return
  }
  func.func @transform_0(%arg0: i32) -> (i32, i32) {
    %c0_i32 = arith.constant 0 : i32
    %c0_i32_0 = arith.constant 0 : i32
    %c0_i32_1 = arith.constant 0 : i32
    return %c0_i32, %c0_i32_0 : i32, i32
  }
  func.func @transform_1(%arg0: i32) -> (i32, i32) {
    %c0_i32 = arith.constant 0 : i32
    %c0_i32_0 = arith.constant 0 : i32
    %c0_i32_1 = arith.constant 0 : i32
    return %c0_i32, %c0_i32_0 : i32, i32
  }
  func.func @transform_2(%arg0: i32) -> (i32, i32) {
    %c0_i32 = arith.constant 0 : i32
    %c0_i32_0 = arith.constant 0 : i32
    %c0_i32_1 = arith.constant 0 : i32
    return %c0_i32, %c0_i32_0 : i32, i32
  }
  func.func @transform_3(%arg0: i32) -> (i32, i32) {
    %c0_i32 = arith.constant 0 : i32
    %c0_i32_0 = arith.constant 0 : i32
    %c0_i32_1 = arith.constant 0 : i32
    return %c0_i32, %c0_i32_0 : i32, i32
  }
  func.func @transform_4(%arg0: i32) -> (i32, i32) {
    %c0_i32 = arith.constant 0 : i32
    %c0_i32_0 = arith.constant 0 : i32
    %c0_i32_1 = arith.constant 0 : i32
    return %c0_i32, %c0_i32_0 : i32, i32
  }
  func.func @transform_5(%arg0: i32) -> (i32, i32) {
    %c0_i32 = arith.constant 0 : i32
    %c0_i32_0 = arith.constant 0 : i32
    %c0_i32_1 = arith.constant 0 : i32
    return %c0_i32, %c0_i32_0 : i32, i32
  }
  func.func @transform_6(%arg0: i32) -> (i32, i32) {
    %c0_i32 = arith.constant 0 : i32
    %c0_i32_0 = arith.constant 0 : i32
    %c0_i32_1 = arith.constant 0 : i32
    return %c0_i32, %c0_i32_0 : i32, i32
  }
  func.func @transform_7(%arg0: i32) -> (i32, i32) {
    %c0_i32 = arith.constant 0 : i32
    %c0_i32_0 = arith.constant 0 : i32
    %c0_i32_1 = arith.constant 0 : i32
    return %c0_i32, %c0_i32_0 : i32, i32
  }
  func.func @transform_8(%arg0: i32) -> (i32, i32) {
    %c0_i32 = arith.constant 0 : i32
    %c0_i32_0 = arith.constant 0 : i32
    %c0_i32_1 = arith.constant 0 : i32
    return %c0_i32, %c0_i32_0 : i32, i32
  }
}

</mosaic_0001>

<llo_original>
// kernel: tpu_custom_call.1
$region0: #{tpu_custom_call.1}
  #allocation0 [shape = 'u32[]', space=smem, size = 0x4, offset = 0x4, fixed_abs, tag = 'smem constant byte address 0x4 - core index']
  #allocation1 [shape = 'u32[72,128]{1,0:T(1,128)}', space=vmem, size = 0x9000, scoped, tag = 'internal scratch']
  #allocation2 [shape = 'f32[72,512]{1,0:T(8,128)}', space=vmem, size = 0x24000, scoped, tag = 'scratch operand']
  #allocation3 [shape = 'f32[72,512]{1,0:T(8,128)}', space=vmem, size = 0x24000, scoped, tag = 'scratch operand']
  %s0 = inlined_call_operand.vmem [shape: bf16[8,128], index: 0, kind: input, shape index: {}]
  %s1 = inlined_call_operand.vmem [shape: f32[4,512], index: 1, kind: input, shape index: {}]
  %s2 = inlined_call_operand.hbm [shape: bf16[4,8], index: 2, kind: input, shape index: {}]
  %s3 = inlined_call_operand.hbm [shape: bf16[128,512], index: 3, kind: input, shape index: {}]
  %s4 = inlined_call_operand.vmem [shape: bf16[8,72], index: 4, kind: input, shape index: {}]
  %s5 = inlined_call_operand.hbm [shape: bf16[8,72], index: 5, kind: input, shape index: {}]
  %s6 = inlined_call_operand.hbm [shape: f32[9,512], index: 6, kind: input, shape index: {}]
  %s7 = inlined_call_operand.vmem [shape: f32[24,1], index: 7, kind: input, shape index: {}]
  %s8 = inlined_call_operand.hbm [shape: f32[8,512], index: 8, kind: output, shape index: {}]
  %s9 = sld [smem:[#allocation0]]
  $region58: #{tpu_custom_call.1} parent=0
    _
  %s11 = ssub.s32 1, %s9
  %s12 = scalar_select 0, %s11, %s9
  $region1: #{tpu_custom_call.1} parent=0
    #allocation4 [shape = 'u8[1024]{0}', space=vmem, size = 0x400, scoped, tag = 'input window, operand 2, single buffered']
    #allocation5 [shape = 's32[1]{0}', space=sflag, size = 0x4, scoped, tag = 'scoped memory for tpu_custom_call.1']
    #allocation6 [shape = 's32[1]{0}', space=sflag, size = 0x4, scoped, tag = 'scoped memory for tpu_custom_call.1']
    #allocation7 [shape = 'u8[131072]{0}', space=vmem, size = 0x20000, scoped, tag = 'input window, operand 3, single buffered']
    #allocation8 [shape = 's32[1]{0}', space=sflag, size = 0x4, scoped, tag = 'scoped memory for tpu_custom_call.1']
    #allocation9 [shape = 'u8[2048]{0}', space=vmem, size = 0x800, scoped, tag = 'input window, operand 5, single buffered']
    #allocation10 [shape = 'u8[32768]{0}', space=vmem, size = 0x8000, scoped, tag = 'input window, operand 6, single buffered']
    #allocation11 [shape = 's32[1]{0}', space=sflag, size = 0x4, scoped, tag = 'scoped memory for tpu_custom_call.1']
    #allocation12 [shape = 'u8[16384]{0}', space=vmem, size = 0x4000, scoped, tag = 'output window, operand 0, single buffered']
    %13 = vsyncpa [#allocation5], 0
    %14 = vsyncpa [#allocation8], 0
    %15 = vsyncpa [#allocation11], 0
    %16 = vsyncpa [#allocation6], 0
    // Predicated region
    $region2: #{tpu_custom_call.1} parent=1 // pred_check
      _
    $region3: #{tpu_custom_call.1} parent=1 // pred_check_branch
      %18 = sbr.rel (0) target = $region5
    $region4: #{tpu_custom_call.1} parent=1 // pred_region
      _
    $region5: #{tpu_custom_call.1} parent=1 // pred_fallthru
      _
    // Predicated region
    $region6: #{tpu_custom_call.1} parent=1 // pred_check
      _
    $region7: #{tpu_custom_call.1} parent=1 // pred_check_branch
      %20 = sbr.rel (0) target = $region9
    $region8: #{tpu_custom_call.1} parent=1 // pred_region
      _
    $region9: #{tpu_custom_call.1} parent=1 // pred_fallthru
      _
    // Predicated region
    $region10: #{tpu_custom_call.1} parent=1 // pred_check
      _
    $region11: #{tpu_custom_call.1} parent=1 // pred_check_branch
      %22 = sbr.rel (0) target = $region13
    $region12: #{tpu_custom_call.1} parent=1 // pred_region
      %24 = vsyncadd [#allocation5], 0
      %s26 = sshll.u32 %s2, 4
      %s27 = int_to_ptr.hbm [resolvable:$true] %s26
      %s28 = sshll.u32 [#allocation4], 4
      %s29 = int_to_ptr.vmem [resolvable:$true] %s28
      %31 = dma.hbm_to_vmem [thread:$0]  %s27, 32, %s29, [#allocation5]
    $region13: #{tpu_custom_call.1} parent=1 // pred_fallthru
      _
    // Predicated region
    $region14: #{tpu_custom_call.1} parent=1 // pred_check
      _
    $region15: #{tpu_custom_call.1} parent=1 // pred_check_branch
      %33 = sbr.rel (0) target = $region17
    $region16: #{tpu_custom_call.1} parent=1 // pred_region
      %35 = vsyncadd [#allocation8], 0
      %s36 = sshll.u32 %s3, 4
      %s37 = int_to_ptr.hbm [resolvable:$true] %s36
      %s38 = sshll.u32 [#allocation7], 4
      %s39 = int_to_ptr.vmem [resolvable:$true] %s38
      %44 = dma.hbm_to_vmem [thread:$0]  %s37, 4096, %s39, [#allocation8], 256, 256, 16
    $region17: #{tpu_custom_call.1} parent=1 // pred_fallthru
      _
    // Predicated region
    $region18: #{tpu_custom_call.1} parent=1 // pred_check
      _
    $region19: #{tpu_custom_call.1} parent=1 // pred_check_branch
      %46 = sbr.rel (0) target = $region21
    $region20: #{tpu_custom_call.1} parent=1 // pred_region
      _
    $region21: #{tpu_custom_call.1} parent=1 // pred_fallthru
      _
    // Predicated region
    $region22: #{tpu_custom_call.1} parent=1 // pred_check
      _
    $region23: #{tpu_custom_call.1} parent=1 // pred_check_branch
      %48 = sbr.rel (0) target = $region25
    $region24: #{tpu_custom_call.1} parent=1 // pred_region
      %50 = vsyncadd [#allocation8], 0
      %s52 = sshll.u32 %s5, 4
      %s53 = int_to_ptr.hbm [resolvable:$true] %s52
      %s54 = sshll.u32 [#allocation9], 4
      %s55 = int_to_ptr.vmem [resolvable:$true] %s54
      %57 = dma.hbm_to_vmem [thread:$0]  %s53, 64, %s55, [#allocation8]
    $region25: #{tpu_custom_call.1} parent=1 // pred_fallthru
      _
    // Predicated region
    $region26: #{tpu_custom_call.1} parent=1 // pred_check
      _
    $region27: #{tpu_custom_call.1} parent=1 // pred_check_branch
      %59 = sbr.rel (0) target = $region29
    $region28: #{tpu_custom_call.1} parent=1 // pred_region
      %61 = vsyncadd [#allocation11], 0
      %s62 = sshll.u32 %s6, 4
      %s63 = int_to_ptr.hbm [resolvable:$true] %s62
      %s64 = sshll.u32 [#allocation10], 4
      %s65 = int_to_ptr.vmem [resolvable:$true] %s64
      %70 = dma.hbm_to_vmem [thread:$0]  %s63, 1024, %s65, [#allocation11], 512, 512, 32
    $region29: #{tpu_custom_call.1} parent=1 // pred_fallthru
      _
    // Predicated region
    $region30: #{tpu_custom_call.1} parent=1 // pred_check
      _
    $region31: #{tpu_custom_call.1} parent=1 // pred_check_branch
      %72 = sbr.rel (0) target = $region33
    $region32: #{tpu_custom_call.1} parent=1 // pred_region
      _
    $region33: #{tpu_custom_call.1} parent=1 // pred_fallthru
      _
    // Predicated region
    $region34: #{tpu_custom_call.1} parent=1 // pred_check
      _
    $region35: #{tpu_custom_call.1} parent=1 // pred_check_branch
      %74 = sbr.rel (0) target = $region37
    $region36: #{tpu_custom_call.1} parent=1 // pred_region
      %76 = dma.done [#allocation5], 32
    $region37: #{tpu_custom_call.1} parent=1 // pred_fallthru
      _
    // Predicated region
    $region38: #{tpu_custom_call.1} parent=1 // pred_check
      _
    $region39: #{tpu_custom_call.1} parent=1 // pred_check_branch
      %78 = sbr.rel (0) target = $region41
    $region40: #{tpu_custom_call.1} parent=1 // pred_region
      %80 = dma.done [#allocation8], 4096
    $region41: #{tpu_custom_call.1} parent=1 // pred_fallthru
      _
    // Predicated region
    $region42: #{tpu_custom_call.1} parent=1 // pred_check
      _
    $region43: #{tpu_custom_call.1} parent=1 // pred_check_branch
      %82 = sbr.rel (0) target = $region45
    $region44: #{tpu_custom_call.1} parent=1 // pred_region
      %84 = dma.done [#allocation8], 64
    $region45: #{tpu_custom_call.1} parent=1 // pred_fallthru
      _
    // Predicated region
    $region46: #{tpu_custom_call.1} parent=1 // pred_check
      _
    $region47: #{tpu_custom_call.1} parent=1 // pred_check_branch
      %86 = sbr.rel (0) target = $region49
    $region48: #{tpu_custom_call.1} parent=1 // pred_region
      %88 = dma.done [#allocation11], 1024
    $region49: #{tpu_custom_call.1} parent=1 // pred_fallthru
      _
    %v90 = vld [vmem:[#allocation4] sm:$0x3]
    %v91 = vld [vmem:[%s0] sm:$0xf]
    %vm92 = vcmask 64512
    %v94 = vsel %vm92, %v90, 0
    %vm96 = vcmask 1043456
    %v98 = vsel %vm96, %v91, 0
    %100 = vmatpush.bf16.msra.mxu0 0
    %101 = vmatpush.bf16.msra.mxu0 0
    %102 = vmatpush.bf16.msra.mxu0 0
    %103 = vmatpush.bf16.msra.mxu0 0
    %104 = vmatpush.bf16.msra.mxu0 0
    %105 = vmatpush.bf16.msra.mxu0 0
    %106 = vmatpush.bf16.msra.mxu0 0
    %107 = vmatpush.bf16.msra.mxu0 %v98
    %108 = vmatmul.bf16.gmra.mxu0 %v94
    %v109 = vpop.f32.mrf.mxu0
    %v110 = vadd.f32 0.0, %v109
    %v111 = vpop.f32.mrf.mxu0
    %112 = vdwg.mxu0
    %v113 = vpack.c.bf16 %v110, %v110
    %v114 = vld [vmem:[#allocation7] sm:$0xff]
    %v115 = vld [vmem:[#allocation7 + $0x8] sm:$0xff]
    %v116 = vld [vmem:[#allocation7 + $0x10] sm:$0xff]
    %v117 = vld [vmem:[#allocation7 + $0x18] sm:$0xff]
    %v118 = vld [vmem:[#allocation7 + $0x20] sm:$0xff]
    %v119 = vld [vmem:[#allocation7 + $0x28] sm:$0xff]
    %v120 = vld [vmem:[#allocation7 + $0x30] sm:$0xff]
    %v121 = vld [vmem:[#allocation7 + $0x38] sm:$0xff]
    %v122 = vld [vmem:[#allocation7 + $0x40] sm:$0xff]
    %v123 = vld [vmem:[#allocation7 + $0x48] sm:$0xff]
    %v124 = vld [vmem:[#allocation7 + $0x50] sm:$0xff]
    %v125 = vld [vmem:[#allocation7 + $0x58] sm:$0xff]
    %v126 = vld [vmem:[#allocation7 + $0x60] sm:$0xff]
    %v127 = vld [vmem:[#allocation7 + $0x68] sm:$0xff]
    %v128 = vld [vmem:[#allocation7 + $0x70] sm:$0xff]
    %v129 = vld [vmem:[#allocation7 + $0x78] sm:$0xff]
    %v130 = vld [vmem:[#allocation7 + $0x80] sm:$0xff]
    %v131 = vld [vmem:[#allocation7 + $0x88] sm:$0xff]
    %v132 = vld [vmem:[#allocation7 + $0x90] sm:$0xff]
    %v133 = vld [vmem:[#allocation7 + $0x98] sm:$0xff]
    %v134 = vld [vmem:[#allocation7 + $0xa0] sm:$0xff]
    %v135 = vld [vmem:[#allocation7 + $0xa8] sm:$0xff]
    %v136 = vld [vmem:[#allocation7 + $0xb0] sm:$0xff]
    %v137 = vld [vmem:[#allocation7 + $0xb8] sm:$0xff]
    %v138 = vld [vmem:[#allocation7 + $0xc0] sm:$0xff]
    %v139 = vld [vmem:[#allocation7 + $0xc8] sm:$0xff]
    %v140 = vld [vmem:[#allocation7 + $0xd0] sm:$0xff]
    %v141 = vld [vmem:[#allocation7 + $0xd8] sm:$0xff]
    %v142 = vld [vmem:[#allocation7 + $0xe0] sm:$0xff]
    %v143 = vld [vmem:[#allocation7 + $0xe8] sm:$0xff]
    %v144 = vld [vmem:[#allocation7 + $0xf0] sm:$0xff]
    %v145 = vld [vmem:[#allocation7 + $0xf8] sm:$0xff]
    %v146 = vld [vmem:[%s7] sm:$0xf]
    %148 = vset.pattern.permute.xlu0 0
    %149 = vperm.xlu0 %148, %v146
    %v150 = vpop.permute.xlu0 %149
    %v184 = vunpack.c.l.b16 %v114
    %v185 = vunpack.c.h.b16 %v114
    %v186 = vunpack.c.l.b16 %v115
    %v187 = vunpack.c.h.b16 %v115
    %v188 = vunpack.c.l.b16 %v116
    %v189 = vunpack.c.h.b16 %v116
    %v190 = vunpack.c.l.b16 %v117
    %v191 = vunpack.c.h.b16 %v117
    %v192 = vunpack.c.l.b16 %v118
    %v193 = vunpack.c.h.b16 %v118
    %v194 = vunpack.c.l.b16 %v119
    %v195 = vunpack.c.h.b16 %v119
    %v196 = vunpack.c.l.b16 %v120
    %v197 = vunpack.c.h.b16 %v120
    %v198 = vunpack.c.l.b16 %v121
    %v199 = vunpack.c.h.b16 %v121
    %v200 = vunpack.c.l.b16 %v122
    %v201 = vunpack.c.h.b16 %v122
    %v202 = vunpack.c.l.b16 %v123
    %v203 = vunpack.c.h.b16 %v123
    %v204 = vunpack.c.l.b16 %v124
    %v205 = vunpack.c.h.b16 %v124
    %v206 = vunpack.c.l.b16 %v125
    %v207 = vunpack.c.h.b16 %v125
    %v208 = vunpack.c.l.b16 %v126
    %v209 = vunpack.c.h.b16 %v126
    %v210 = vunpack.c.l.b16 %v127
    %v211 = vunpack.c.h.b16 %v127
    %v212 = vunpack.c.l.b16 %v128
    %v213 = vunpack.c.h.b16 %v128
    %v214 = vunpack.c.l.b16 %v129
    %v215 = vunpack.c.h.b16 %v129
    %v216 = vunpack.c.l.b16 %v130
    %v217 = vunpack.c.h.b16 %v130
    %v218 = vunpack.c.l.b16 %v131
    %v219 = vunpack.c.h.b16 %v131
    %v220 = vunpack.c.l.b16 %v132
    %v221 = vunpack.c.h.b16 %v132
    %v222 = vunpack.c.l.b16 %v133
    %v223 = vunpack.c.h.b16 %v133
    %v224 = vunpack.c.l.b16 %v134
    %v225 = vunpack.c.h.b16 %v134
    %v226 = vunpack.c.l.b16 %v135
    %v227 = vunpack.c.h.b16 %v135
    %v228 = vunpack.c.l.b16 %v136
    %v229 = vunpack.c.h.b16 %v136
    %v230 = vunpack.c.l.b16 %v137
    %v231 = vunpack.c.h.b16 %v137
    %v232 = vunpack.c.l.b16 %v138
    %v233 = vunpack.c.h.b16 %v138
    %v234 = vunpack.c.l.b16 %v139
    %v235 = vunpack.c.h.b16 %v139
    %v236 = vunpack.c.l.b16 %v140
    %v237 = vunpack.c.h.b16 %v140
    %v238 = vunpack.c.l.b16 %v141
    %v239 = vunpack.c.h.b16 %v141
    %v240 = vunpack.c.l.b16 %v142
    %v241 = vunpack.c.h.b16 %v142
    %v242 = vunpack.c.l.b16 %v143
    %v243 = vunpack.c.h.b16 %v143
    %v244 = vunpack.c.l.b16 %v144
    %v245 = vunpack.c.h.b16 %v144
    %v246 = vunpack.c.l.b16 %v145
    %v247 = vunpack.c.h.b16 %v145
    %v248 = vpack.c.b16 %v188, %v184
    %v249 = vpack.c.b16 %v189, %v185
    %v250 = vpack.c.b16 %v190, %v186
    %v251 = vpack.c.b16 %v191, %v187
    %v252 = vpack.c.b16 %v196, %v192
    %v253 = vpack.c.b16 %v197, %v193
    %v254 = vpack.c.b16 %v198, %v194
    %v255 = vpack.c.b16 %v199, %v195
    %v256 = vpack.c.b16 %v204, %v200
    %v257 = vpack.c.b16 %v205, %v201
    %v258 = vpack.c.b16 %v206, %v202
    %v259 = vpack.c.b16 %v207, %v203
    %v260 = vpack.c.b16 %v212, %v208
    %v261 = vpack.c.b16 %v213, %v209
    %v262 = vpack.c.b16 %v214, %v210
    %v263 = vpack.c.b16 %v215, %v211
    %v264 = vpack.c.b16 %v220, %v216
    %v265 = vpack.c.b16 %v221, %v217
    %v266 = vpack.c.b16 %v222, %v218
    %v267 = vpack.c.b16 %v223, %v219
    %v268 = vpack.c.b16 %v228, %v224
    %v269 = vpack.c.b16 %v229, %v225
    %v270 = vpack.c.b16 %v230, %v226
    %v271 = vpack.c.b16 %v231, %v227
    %v272 = vpack.c.b16 %v236, %v232
    %v273 = vpack.c.b16 %v237, %v233
    %v274 = vpack.c.b16 %v238, %v234
    %v275 = vpack.c.b16 %v239, %v235
    %v276 = vpack.c.b16 %v244, %v240
    %v277 = vpack.c.b16 %v245, %v241
    %v278 = vpack.c.b16 %v246, %v242
    %v279 = vpack.c.b16 %v247, %v243
    %312 = vmatpush.bf16.msra.mxu0 %v276
    %313 = vmatpush.bf16.msra.mxu0 %v272
    %314 = vmatpush.bf16.msra.mxu0 %v268
    %315 = vmatpush.bf16.msra.mxu0 %v264
    %316 = vmatpush.bf16.msra.mxu0 %v260
    %317 = vmatpush.bf16.msra.mxu0 %v256
    %318 = vmatpush.bf16.msra.mxu0 %v252
    %319 = vmatpush.bf16.msra.mxu0 %v248
    %320 = vmatmul.bf16.gmra.mxu0 %v113
    %v321 = vpop.f32.mrf.mxu0
    %v322 = vadd.f32 %v150, %v321
    %v323 = vpop.f32.mrf.mxu0
    %324 = vdwg.mxu0
    %325 = vmatpush.bf16.msra.mxu0 %v277
    %326 = vmatpush.bf16.msra.mxu0 %v273
    %327 = vmatpush.bf16.msra.mxu0 %v269
    %328 = vmatpush.bf16.msra.mxu0 %v265
    %329 = vmatpush.bf16.msra.mxu0 %v261
    %330 = vmatpush.bf16.msra.mxu0 %v257
    %331 = vmatpush.bf16.msra.mxu0 %v253
    %332 = vmatpush.bf16.msra.mxu0 %v249
    %333 = vmatmul.bf16.gmra.mxu0 %v113
    %v334 = vpop.f32.mrf.mxu0
    %v335 = vadd.f32 %v150, %v334
    %v336 = vpop.f32.mrf.mxu0
    %337 = vdwg.mxu0
    %338 = vmatpush.bf16.msra.mxu0 %v278
    %339 = vmatpush.bf16.msra.mxu0 %v274
    %340 = vmatpush.bf16.msra.mxu0 %v270
    %341 = vmatpush.bf16.msra.mxu0 %v266
    %342 = vmatpush.bf16.msra.mxu0 %v262
    %343 = vmatpush.bf16.msra.mxu0 %v258
    %344 = vmatpush.bf16.msra.mxu0 %v254
    %345 = vmatpush.bf16.msra.mxu0 %v250
    %346 = vmatmul.bf16.gmra.mxu0 %v113
    %v347 = vpop.f32.mrf.mxu0
    %v348 = vadd.f32 %v150, %v347
    %v349 = vpop.f32.mrf.mxu0
    %350 = vdwg.mxu0
    %351 = vmatpush.bf16.msra.mxu0 %v279
    %352 = vmatpush.bf16.msra.mxu0 %v275
    %353 = vmatpush.bf16.msra.mxu0 %v271
    %354 = vmatpush.bf16.msra.mxu0 %v267
    %355 = vmatpush.bf16.msra.mxu0 %v263
    %356 = vmatpush.bf16.msra.mxu0 %v259
    %357 = vmatpush.bf16.msra.mxu0 %v255
    %358 = vmatpush.bf16.msra.mxu0 %v251
    %359 = vmatmul.bf16.gmra.mxu0 %v113
    %v360 = vpop.f32.mrf.mxu0
    %v361 = vadd.f32 %v150, %v360
    %v362 = vpop.f32.mrf.mxu0
    %363 = vdwg.mxu0
    %v364 = vld [vmem:[%s1] sm:$0xff]
    %v365 = vld [vmem:[%s1 + $0x8] sm:$0xff]
    %368 = vst [vmem:[#allocation1] ss:$2 sm:$0xff] %v364
    %s369 = scalar_lea.vmem [#allocation1], 16
    %370 = vst [vmem:[%s369] ss:$2 sm:$0xff] %v365
    %v371 = vld.sshfl [vmem:[#allocation1] sm:$0xff pattern:$0x75316420]
    %v372 = vld.sshfl [vmem:[#allocation1 + $0x8] sm:$0xff pattern:$0x75316420]
    %v373 = vld.sshfl [vmem:[#allocation1 + $0x10] sm:$0xff pattern:$0x75316420]
    %v374 = vld.sshfl [vmem:[#allocation1 + $0x18] sm:$0xff pattern:$0x75316420]
    %379 = vrot.lane.b32.xlu0 %v371, 17
    %v380 = vpop.permute.xlu0 %379
    %381 = vrot.lane.b32.xlu0 %v372, 17
    %v382 = vpop.permute.xlu0 %381
    %383 = vrot.lane.b32.xlu0 %v373, 17
    %v384 = vpop.permute.xlu0 %383
    %385 = vrot.lane.b32.xlu0 %v374, 17
    %v386 = vpop.permute.xlu0 %385
    %v387 = vlaneseq
    %v388 = vand.u32 %v387, 127
    %vm389 = vcmp.lt.s32.totalorder %v388, 17
    %v390 = vsel %vm389, %v384, %v386
    %v391 = vsel %vm389, %v382, %v384
    %v392 = vsel %vm389, %v380, %v382
    %v393 = vsel %vm389, %v386, %v380
    %v394 = vld [vmem:[#allocation10] ss:$8 sm:$0xf]
    %v396 = vperm.slane %v394, 0
    %v397 = vperm.slane %v394, 1
    %v398 = vperm.slane %v394, 2
    %v399 = vperm.slane %v394, 3
    %v404 = vmul.f32 %v393, %v396
    %v405 = vmul.f32 %v392, %v397
    %v406 = vmul.f32 %v391, %v398
    %v407 = vmul.f32 %v390, %v399
    %408 = vst [vmem:[#allocation2] sm:$0xf] %v404
    %409 = vst [vmem:[#allocation2 + $0x8] sm:$0xf] %v405
    %410 = vst [vmem:[#allocation2 + $0x10] sm:$0xf] %v406
    %411 = vst [vmem:[#allocation2 + $0x18] sm:$0xf] %v407
    %412 = vrot.lane.b32.xlu0 %v322, 17
    %v413 = vpop.permute.xlu0 %412
    %414 = vrot.lane.b32.xlu0 %v335, 17
    %v415 = vpop.permute.xlu0 %414
    %416 = vrot.lane.b32.xlu0 %v348, 17
    %v417 = vpop.permute.xlu0 %416
    %418 = vrot.lane.b32.xlu0 %v361, 17
    %v419 = vpop.permute.xlu0 %418
    %v420 = vsel %vm389, %v417, %v419
    %v421 = vsel %vm389, %v415, %v417
    %v422 = vsel %vm389, %v413, %v415
    %v423 = vsel %vm389, %v419, %v413
    %v424 = vld [vmem:[#allocation10] ss:$8 sm:$0xf]
    %v426 = vperm.slane %v424, 0
    %v427 = vperm.slane %v424, 1
    %v428 = vperm.slane %v424, 2
    %v429 = vperm.slane %v424, 3
    %v434 = vmul.f32 %v423, %v426
    %v435 = vmul.f32 %v422, %v427
    %v436 = vmul.f32 %v421, %v428
    %v437 = vmul.f32 %v420, %v429
    %v442 = vrot.slane %v434, 4
    %v443 = vrot.slane %v435, 4
    %v444 = vrot.slane %v436, 4
    %v445 = vrot.slane %v437, 4
    %450 = vst [vmem:[#allocation2] sm:$0xf0] %v442
    %451 = vst [vmem:[#allocation2 + $0x8] sm:$0xf0] %v443
    %452 = vst [vmem:[#allocation2 + $0x10] sm:$0xf0] %v444
    %453 = vst [vmem:[#allocation2 + $0x18] sm:$0xf0] %v445
    %454 = vst [vmem:[#allocation1] ss:$2 sm:$0xff] %v364
    %s455 = scalar_lea.vmem [#allocation1], 16
    %456 = vst [vmem:[%s455] ss:$2 sm:$0xff] %v365
    %v457 = vld.sshfl [vmem:[#allocation1] sm:$0xff pattern:$0x75316420]
    %v458 = vld.sshfl [vmem:[#allocation1 + $0x8] sm:$0xff pattern:$0x75316420]
    %v459 = vld.sshfl [vmem:[#allocation1 + $0x10] sm:$0xff pattern:$0x75316420]
    %v460 = vld.sshfl [vmem:[#allocation1 + $0x18] sm:$0xff pattern:$0x75316420]
    %465 = vrot.lane.b32.xlu0 %v457, 16
    %v466 = vpop.permute.xlu0 %465
    %467 = vrot.lane.b32.xlu0 %v458, 16
    %v468 = vpop.permute.xlu0 %467
    %469 = vrot.lane.b32.xlu0 %v459, 16
    %v470 = vpop.permute.xlu0 %469
    %471 = vrot.lane.b32.xlu0 %v460, 16
    %v472 = vpop.permute.xlu0 %471
    %vm473 = vcmp.lt.s32.totalorder %v388, 16
    %v474 = vsel %vm473, %v470, %v472
    %v475 = vsel %vm473, %v468, %v470
    %v476 = vsel %vm473, %v466, %v468
    %v477 = vsel %vm473, %v472, %v466
    %s478 = scalar_lea.vmem [#allocation10], 1
    %v479 = vld [vmem:[%s478] ss:$8 sm:$0xf]
    %v481 = vperm.slane %v479, 0
    %v482 = vperm.slane %v479, 1
    %v483 = vperm.slane %v479, 2
    %v484 = vperm.slane %v479, 3
    %v489 = vmul.f32 %v477, %v481
    %v490 = vmul.f32 %v476, %v482
    %v491 = vmul.f32 %v475, %v483
    %v492 = vmul.f32 %v474, %v484
    %493 = vst [vmem:[#allocation2 + $0x20] sm:$0xf] %v489
    %494 = vst [vmem:[#allocation2 + $0x28] sm:$0xf] %v490
    %495 = vst [vmem:[#allocation2 + $0x30] sm:$0xf] %v491
    %496 = vst [vmem:[#allocation2 + $0x38] sm:$0xf] %v492
    %497 = vrot.lane.b32.xlu0 %v322, 16
    %v498 = vpop.permute.xlu0 %497
    %499 = vrot.lane.b32.xlu0 %v335, 16
    %v500 = vpop.permute.xlu0 %499
    %501 = vrot.lane.b32.xlu0 %v348, 16
    %v502 = vpop.permute.xlu0 %501
    %503 = vrot.lane.b32.xlu0 %v361, 16
    %v504 = vpop.permute.xlu0 %503
    %v505 = vsel %vm473, %v502, %v504
    %v506 = vsel %vm473, %v500, %v502
    %v507 = vsel %vm473, %v498, %v500
    %v508 = vsel %vm473, %v504, %v498
    %v509 = vld [vmem:[%s478] ss:$8 sm:$0xf]
    %v511 = vperm.slane %v509, 0
    %v512 = vperm.slane %v509, 1
    %v513 = vperm.slane %v509, 2
    %v514 = vperm.slane %v509, 3
    %v519 = vmul.f32 %v508, %v511
    %v520 = vmul.f32 %v507, %v512
    %v521 = vmul.f32 %v506, %v513
    %v522 = vmul.f32 %v505, %v514
    %v527 = vrot.slane %v519, 4
    %v528 = vrot.slane %v520, 4
    %v529 = vrot.slane %v521, 4
    %v530 = vrot.slane %v522, 4
    %535 = vst [vmem:[#allocation2 + $0x20] sm:$0xf0] %v527
    %536 = vst [vmem:[#allocation2 + $0x28] sm:$0xf0] %v528
    %537 = vst [vmem:[#allocation2 + $0x30] sm:$0xf0] %v529
    %538 = vst [vmem:[#allocation2 + $0x38] sm:$0xf0] %v530
    %539 = vst [vmem:[#allocation1] ss:$2 sm:$0xff] %v364
    %s540 = scalar_lea.vmem [#allocation1], 16
    %541 = vst [vmem:[%s540] ss:$2 sm:$0xff] %v365
    %v542 = vld.sshfl [vmem:[#allocation1] sm:$0xff pattern:$0x75316420]
    %v543 = vld.sshfl [vmem:[#allocation1 + $0x8] sm:$0xff pattern:$0x75316420]
    %v544 = vld.sshfl [vmem:[#allocation1 + $0x10] sm:$0xff pattern:$0x75316420]
    %v545 = vld.sshfl [vmem:[#allocation1 + $0x18] sm:$0xff pattern:$0x75316420]
    %550 = vrot.lane.b32.xlu0 %v542, 15
    %v551 = vpop.permute.xlu0 %550
    %552 = vrot.lane.b32.xlu0 %v543, 15
    %v553 = vpop.permute.xlu0 %552
    %554 = vrot.lane.b32.xlu0 %v544, 15
    %v555 = vpop.permute.xlu0 %554
    %556 = vrot.lane.b32.xlu0 %v545, 15
    %v557 = vpop.permute.xlu0 %556
    %vm558 = vcmp.lt.s32.totalorder %v388, 15
    %v559 = vsel %vm558, %v555, %v557
    %v560 = vsel %vm558, %v553, %v555
    %v561 = vsel %vm558, %v551, %v553
    %v562 = vsel %vm558, %v557, %v551
    %s563 = scalar_lea.vmem [#allocation10], 2
    %v564 = vld [vmem:[%s563] ss:$8 sm:$0xf]
    %v566 = vperm.slane %v564, 0
    %v567 = vperm.slane %v564, 1
    %v568 = vperm.slane %v564, 2
    %v569 = vperm.slane %v564, 3
    %v574 = vmul.f32 %v562, %v566
    %v575 = vmul.f32 %v561, %v567
    %v576 = vmul.f32 %v560, %v568
    %v577 = vmul.f32 %v559, %v569
    %578 = vst [vmem:[#allocation2 + $0x40] sm:$0xf] %v574
    %579 = vst [vmem:[#allocation2 + $0x48] sm:$0xf] %v575
    %580 = vst [vmem:[#allocation2 + $0x50] sm:$0xf] %v576
    %581 = vst [vmem:[#allocation2 + $0x58] sm:$0xf] %v577
    %582 = vrot.lane.b32.xlu0 %v322, 15
    %v583 = vpop.permute.xlu0 %582
    %584 = vrot.lane.b32.xlu0 %v335, 15
    %v585 = vpop.permute.xlu0 %584
    %586 = vrot.lane.b32.xlu0 %v348, 15
    %v587 = vpop.permute.xlu0 %586
    %588 = vrot.lane.b32.xlu0 %v361, 15
    %v589 = vpop.permute.xlu0 %588
    %v590 = vsel %vm558, %v587, %v589
    %v591 = vsel %vm558, %v585, %v587
    %v592 = vsel %vm558, %v583, %v585
    %v593 = vsel %vm558, %v589, %v583
    %v594 = vld [vmem:[%s563] ss:$8 sm:$0xf]
    %v596 = vperm.slane %v594, 0
    %v597 = vperm.slane %v594, 1
    %v598 = vperm.slane %v594, 2
    %v599 = vperm.slane %v594, 3
    %v604 = vmul.f32 %v593, %v596
    %v605 = vmul.f32 %v592, %v597
    %v606 = vmul.f32 %v591, %v598
    %v607 = vmul.f32 %v590, %v599
    %v612 = vrot.slane %v604, 4
    %v613 = vrot.slane %v605, 4
    %v614 = vrot.slane %v606, 4
    %v615 = vrot.slane %v607, 4
    %620 = vst [vmem:[#allocation2 + $0x40] sm:$0xf0] %v612
    %621 = vst [vmem:[#allocation2 + $0x48] sm:$0xf0] %v613
    %622 = vst [vmem:[#allocation2 + $0x50] sm:$0xf0] %v614
    %623 = vst [vmem:[#allocation2 + $0x58] sm:$0xf0] %v615
    %624 = vst [vmem:[#allocation1] ss:$2 sm:$0xff] %v364
    %s625 = scalar_lea.vmem [#allocation1], 16
    %626 = vst [vmem:[%s625] ss:$2 sm:$0xff] %v365
    %v627 = vld.sshfl [vmem:[#allocation1] sm:$0xff pattern:$0x75316420]
    %v628 = vld.sshfl [vmem:[#allocation1 + $0x8] sm:$0xff pattern:$0x75316420]
    %v629 = vld.sshfl [vmem:[#allocation1 + $0x10] sm:$0xff pattern:$0x75316420]
    %v630 = vld.sshfl [vmem:[#allocation1 + $0x18] sm:$0xff pattern:$0x75316420]
    %635 = vrot.lane.b32.xlu0 %v627, 1
    %v636 = vpop.permute.xlu0 %635
    %637 = vrot.lane.b32.xlu0 %v628, 1
    %v638 = vpop.permute.xlu0 %637
    %639 = vrot.lane.b32.xlu0 %v629, 1
    %v640 = vpop.permute.xlu0 %639
    %641 = vrot.lane.b32.xlu0 %v630, 1
    %v642 = vpop.permute.xlu0 %641
    %vm643 = vcmp.lt.s32.totalorder %v388, 1
    %v644 = vsel %vm643, %v640, %v642
    %v645 = vsel %vm643, %v638, %v640
    %v646 = vsel %vm643, %v636, %v638
    %v647 = vsel %vm643, %v642, %v636
    %s648 = scalar_lea.vmem [#allocation10], 3
    %v649 = vld [vmem:[%s648] ss:$8 sm:$0xf]
    %v651 = vperm.slane %v649, 0
    %v652 = vperm.slane %v649, 1
    %v653 = vperm.slane %v649, 2
    %v654 = vperm.slane %v649, 3
    %v659 = vmul.f32 %v647, %v651
    %v660 = vmul.f32 %v646, %v652
    %v661 = vmul.f32 %v645, %v653
    %v662 = vmul.f32 %v644, %v654
    %663 = vst [vmem:[#allocation2 + $0x60] sm:$0xf] %v659
    %664 = vst [vmem:[#allocation2 + $0x68] sm:$0xf] %v660
    %665 = vst [vmem:[#allocation2 + $0x70] sm:$0xf] %v661
    %666 = vst [vmem:[#allocation2 + $0x78] sm:$0xf] %v662
    %667 = vrot.lane.b32.xlu0 %v322, 1
    %v668 = vpop.permute.xlu0 %667
    %669 = vrot.lane.b32.xlu0 %v335, 1
    %v670 = vpop.permute.xlu0 %669
    %671 = vrot.lane.b32.xlu0 %v348, 1
    %v672 = vpop.permute.xlu0 %671
    %673 = vrot.lane.b32.xlu0 %v361, 1
    %v674 = vpop.permute.xlu0 %673
    %v675 = vsel %vm643, %v672, %v674
    %v676 = vsel %vm643, %v670, %v672
    %v677 = vsel %vm643, %v668, %v670
    %v678 = vsel %vm643, %v674, %v668
    %v679 = vld [vmem:[%s648] ss:$8 sm:$0xf]
    %v681 = vperm.slane %v679, 0
    %v682 = vperm.slane %v679, 1
    %v683 = vperm.slane %v679, 2
    %v684 = vperm.slane %v679, 3
    %v689 = vmul.f32 %v678, %v681
    %v690 = vmul.f32 %v677, %v682
    %v691 = vmul.f32 %v676, %v683
    %v692 = vmul.f32 %v675, %v684
    %v697 = vrot.slane %v689, 4
    %v698 = vrot.slane %v690, 4
    %v699 = vrot.slane %v691, 4
    %v700 = vrot.slane %v692, 4
    %705 = vst [vmem:[#allocation2 + $0x60] sm:$0xf0] %v697
    %706 = vst [vmem:[#allocation2 + $0x68] sm:$0xf0] %v698
    %707 = vst [vmem:[#allocation2 + $0x70] sm:$0xf0] %v699
    %708 = vst [vmem:[#allocation2 + $0x78] sm:$0xf0] %v700
    %709 = vst [vmem:[#allocation1] ss:$2 sm:$0xff] %v364
    %s710 = scalar_lea.vmem [#allocation1], 16
    %711 = vst [vmem:[%s710] ss:$2 sm:$0xff] %v365
    %v712 = vld.sshfl [vmem:[#allocation1] sm:$0xff pattern:$0x75316420]
    %v713 = vld.sshfl [vmem:[#allocation1 + $0x8] sm:$0xff pattern:$0x75316420]
    %v714 = vld.sshfl [vmem:[#allocation1 + $0x10] sm:$0xff pattern:$0x75316420]
    %v715 = vld.sshfl [vmem:[#allocation1 + $0x18] sm:$0xff pattern:$0x75316420]
    %720 = vst [vmem:[#allocation2 + $0x80] sm:$0xf] %v712
    %721 = vst [vmem:[#allocation2 + $0x88] sm:$0xf] %v713
    %722 = vst [vmem:[#allocation2 + $0x90] sm:$0xf] %v714
    %723 = vst [vmem:[#allocation2 + $0x98] sm:$0xf] %v715
    %v728 = vrot.slane %v322, 4
    %v729 = vrot.slane %v335, 4
    %v730 = vrot.slane %v348, 4
    %v731 = vrot.slane %v361, 4
    %736 = vst [vmem:[#allocation2 + $0x80] sm:$0xf0] %v728
    %737 = vst [vmem:[#allocation2 + $0x88] sm:$0xf0] %v729
    %738 = vst [vmem:[#allocation2 + $0x90] sm:$0xf0] %v730
    %739 = vst [vmem:[#allocation2 + $0x98] sm:$0xf0] %v731
    %740 = vst [vmem:[#allocation1] ss:$2 sm:$0xff] %v364
    %s741 = scalar_lea.vmem [#allocation1], 16
    %742 = vst [vmem:[%s741] ss:$2 sm:$0xff] %v365
    %v743 = vld.sshfl [vmem:[#allocation1] sm:$0xff pattern:$0x75316420]
    %v744 = vld.sshfl [vmem:[#allocation1 + $0x8] sm:$0xff pattern:$0x75316420]
    %v745 = vld.sshfl [vmem:[#allocation1 + $0x10] sm:$0xff pattern:$0x75316420]
    %v746 = vld.sshfl [vmem:[#allocation1 + $0x18] sm:$0xff pattern:$0x75316420]
    %751 = vrot.lane.b32.xlu0 %v743, 127
    %v752 = vpop.permute.xlu0 %751
    %753 = vrot.lane.b32.xlu0 %v744, 127
    %v754 = vpop.permute.xlu0 %753
    %755 = vrot.lane.b32.xlu0 %v745, 127
    %v756 = vpop.permute.xlu0 %755
    %757 = vrot.lane.b32.xlu0 %v746, 127
    %v758 = vpop.permute.xlu0 %757
    %vm759 = vcmp.lt.s32.totalorder %v388, 127
    %v760 = vsel %vm759, %v756, %v758
    %v761 = vsel %vm759, %v754, %v756
    %v762 = vsel %vm759, %v752, %v754
    %v763 = vsel %vm759, %v758, %v752
    %s764 = scalar_lea.vmem [#allocation10], 5
    %v765 = vld [vmem:[%s764] ss:$8 sm:$0xf]
    %v767 = vperm.slane %v765, 0
    %v768 = vperm.slane %v765, 1
    %v769 = vperm.slane %v765, 2
    %v770 = vperm.slane %v765, 3
    %v775 = vmul.f32 %v762, %v767
    %v776 = vmul.f32 %v761, %v768
    %v777 = vmul.f32 %v760, %v769
    %v778 = vmul.f32 %v763, %v770
    %779 = vst [vmem:[#allocation2 + $0xa0] sm:$0xf] %v775
    %780 = vst [vmem:[#allocation2 + $0xa8] sm:$0xf] %v776
    %781 = vst [vmem:[#allocation2 + $0xb0] sm:$0xf] %v777
    %782 = vst [vmem:[#allocation2 + $0xb8] sm:$0xf] %v778
    %783 = vrot.lane.b32.xlu0 %v322, 127
    %v784 = vpop.permute.xlu0 %783
    %785 = vrot.lane.b32.xlu0 %v335, 127
    %v786 = vpop.permute.xlu0 %785
    %787 = vrot.lane.b32.xlu0 %v348, 127
    %v788 = vpop.permute.xlu0 %787
    %789 = vrot.lane.b32.xlu0 %v361, 127
    %v790 = vpop.permute.xlu0 %789
    %v791 = vsel %vm759, %v788, %v790
    %v792 = vsel %vm759, %v786, %v788
    %v793 = vsel %vm759, %v784, %v786
    %v794 = vsel %vm759, %v790, %v784
    %v795 = vld [vmem:[%s764] ss:$8 sm:$0xf]
    %v797 = vperm.slane %v795, 0
    %v798 = vperm.slane %v795, 1
    %v799 = vperm.slane %v795, 2
    %v800 = vperm.slane %v795, 3
    %v805 = vmul.f32 %v793, %v797
    %v806 = vmul.f32 %v792, %v798
    %v807 = vmul.f32 %v791, %v799
    %v808 = vmul.f32 %v794, %v800
    %v813 = vrot.slane %v805, 4
    %v814 = vrot.slane %v806, 4
    %v815 = vrot.slane %v807, 4
    %v816 = vrot.slane %v808, 4
    %821 = vst [vmem:[#allocation2 + $0xa0] sm:$0xf0] %v813
    %822 = vst [vmem:[#allocation2 + $0xa8] sm:$0xf0] %v814
    %823 = vst [vmem:[#allocation2 + $0xb0] sm:$0xf0] %v815
    %824 = vst [vmem:[#allocation2 + $0xb8] sm:$0xf0] %v816
    %825 = vst [vmem:[#allocation1] ss:$2 sm:$0xff] %v364
    %s826 = scalar_lea.vmem [#allocation1], 16
    %827 = vst [vmem:[%s826] ss:$2 sm:$0xff] %v365
    %v828 = vld.sshfl [vmem:[#allocation1] sm:$0xff pattern:$0x75316420]
    %v829 = vld.sshfl [vmem:[#allocation1 + $0x8] sm:$0xff pattern:$0x75316420]
    %v830 = vld.sshfl [vmem:[#allocation1 + $0x10] sm:$0xff pattern:$0x75316420]
    %v831 = vld.sshfl [vmem:[#allocation1 + $0x18] sm:$0xff pattern:$0x75316420]
    %836 = vrot.lane.b32.xlu0 %v828, 113
    %v837 = vpop.permute.xlu0 %836
    %838 = vrot.lane.b32.xlu0 %v829, 113
    %v839 = vpop.permute.xlu0 %838
    %840 = vrot.lane.b32.xlu0 %v830, 113
    %v841 = vpop.permute.xlu0 %840
    %842 = vrot.lane.b32.xlu0 %v831, 113
    %v843 = vpop.permute.xlu0 %842
    %vm844 = vcmp.lt.s32.totalorder %v388, 113
    %v845 = vsel %vm844, %v841, %v843
    %v846 = vsel %vm844, %v839, %v841
    %v847 = vsel %vm844, %v837, %v839
    %v848 = vsel %vm844, %v843, %v837
    %s849 = scalar_lea.vmem [#allocation10], 6
    %v850 = vld [vmem:[%s849] ss:$8 sm:$0xf]
    %v852 = vperm.slane %v850, 0
    %v853 = vperm.slane %v850, 1
    %v854 = vperm.slane %v850, 2
    %v855 = vperm.slane %v850, 3
    %v860 = vmul.f32 %v847, %v852
    %v861 = vmul.f32 %v846, %v853
    %v862 = vmul.f32 %v845, %v854
    %v863 = vmul.f32 %v848, %v855
    %864 = vst [vmem:[#allocation2 + $0xc0] sm:$0xf] %v860
    %865 = vst [vmem:[#allocation2 + $0xc8] sm:$0xf] %v861
    %866 = vst [vmem:[#allocation2 + $0xd0] sm:$0xf] %v862
    %867 = vst [vmem:[#allocation2 + $0xd8] sm:$0xf] %v863
    %868 = vrot.lane.b32.xlu0 %v322, 113
    %v869 = vpop.permute.xlu0 %868
    %870 = vrot.lane.b32.xlu0 %v335, 113
    %v871 = vpop.permute.xlu0 %870
    %872 = vrot.lane.b32.xlu0 %v348, 113
    %v873 = vpop.permute.xlu0 %872
    %874 = vrot.lane.b32.xlu0 %v361, 113
    %v875 = vpop.permute.xlu0 %874
    %v876 = vsel %vm844, %v873, %v875
    %v877 = vsel %vm844, %v871, %v873
    %v878 = vsel %vm844, %v869, %v871
    %v879 = vsel %vm844, %v875, %v869
    %v880 = vld [vmem:[%s849] ss:$8 sm:$0xf]
    %v882 = vperm.slane %v880, 0
    %v883 = vperm.slane %v880, 1
    %v884 = vperm.slane %v880, 2
    %v885 = vperm.slane %v880, 3
    %v890 = vmul.f32 %v878, %v882
    %v891 = vmul.f32 %v877, %v883
    %v892 = vmul.f32 %v876, %v884
    %v893 = vmul.f32 %v879, %v885
    %v898 = vrot.slane %v890, 4
    %v899 = vrot.slane %v891, 4
    %v900 = vrot.slane %v892, 4
    %v901 = vrot.slane %v893, 4
    %906 = vst [vmem:[#allocation2 + $0xc0] sm:$0xf0] %v898
    %907 = vst [vmem:[#allocation2 + $0xc8] sm:$0xf0] %v899
    %908 = vst [vmem:[#allocation2 + $0xd0] sm:$0xf0] %v900
    %909 = vst [vmem:[#allocation2 + $0xd8] sm:$0xf0] %v901
    %910 = vst [vmem:[#allocation1] ss:$2 sm:$0xff] %v364
    %s911 = scalar_lea.vmem [#allocation1], 16
    %912 = vst [vmem:[%s911] ss:$2 sm:$0xff] %v365
    %v913 = vld.sshfl [vmem:[#allocation1] sm:$0xff pattern:$0x75316420]
    %v914 = vld.sshfl [vmem:[#allocation1 + $0x8] sm:$0xff pattern:$0x75316420]
    %v915 = vld.sshfl [vmem:[#allocation1 + $0x10] sm:$0xff pattern:$0x75316420]
    %v916 = vld.sshfl [vmem:[#allocation1 + $0x18] sm:$0xff pattern:$0x75316420]
    %921 = vrot.lane.b32.xlu0 %v913, 112
    %v922 = vpop.permute.xlu0 %921
    %923 = vrot.lane.b32.xlu0 %v914, 112
    %v924 = vpop.permute.xlu0 %923
    %925 = vrot.lane.b32.xlu0 %v915, 112
    %v926 = vpop.permute.xlu0 %925
    %927 = vrot.lane.b32.xlu0 %v916, 112
    %v928 = vpop.permute.xlu0 %927
    %vm929 = vcmp.lt.s32.totalorder %v388, 112
    %v930 = vsel %vm929, %v926, %v928
    %v931 = vsel %vm929, %v924, %v926
    %v932 = vsel %vm929, %v922, %v924
    %v933 = vsel %vm929, %v928, %v922
    %s934 = scalar_lea.vmem [#allocation10], 7
    %v935 = vld [vmem:[%s934] ss:$8 sm:$0xf]
    %v937 = vperm.slane %v935, 0
    %v938 = vperm.slane %v935, 1
    %v939 = vperm.slane %v935, 2
    %v940 = vperm.slane %v935, 3
    %v945 = vmul.f32 %v932, %v937
    %v946 = vmul.f32 %v931, %v938
    %v947 = vmul.f32 %v930, %v939
    %v948 = vmul.f32 %v933, %v940
    %949 = vst [vmem:[#allocation2 + $0xe0] sm:$0xf] %v945
    %950 = vst [vmem:[#allocation2 + $0xe8] sm:$0xf] %v946
    %951 = vst [vmem:[#allocation2 + $0xf0] sm:$0xf] %v947
    %952 = vst [vmem:[#allocation2 + $0xf8] sm:$0xf] %v948
    %953 = vrot.lane.b32.xlu0 %v322, 112
    %v954 = vpop.permute.xlu0 %953
    %955 = vrot.lane.b32.xlu0 %v335, 112
    %v956 = vpop.permute.xlu0 %955
    %957 = vrot.lane.b32.xlu0 %v348, 112
    %v958 = vpop.permute.xlu0 %957
    %959 = vrot.lane.b32.xlu0 %v361, 112
    %v960 = vpop.permute.xlu0 %959
    %v961 = vsel %vm929, %v958, %v960
    %v962 = vsel %vm929, %v956, %v958
    %v963 = vsel %vm929, %v954, %v956
    %v964 = vsel %vm929, %v960, %v954
    %v965 = vld [vmem:[%s934] ss:$8 sm:$0xf]
    %v967 = vperm.slane %v965, 0
    %v968 = vperm.slane %v965, 1
    %v969 = vperm.slane %v965, 2
    %v970 = vperm.slane %v965, 3
    %v975 = vmul.f32 %v963, %v967
    %v976 = vmul.f32 %v962, %v968
    %v977 = vmul.f32 %v961, %v969
    %v978 = vmul.f32 %v964, %v970
    %v983 = vrot.slane %v975, 4
    %v984 = vrot.slane %v976, 4
    %v985 = vrot.slane %v977, 4
    %v986 = vrot.slane %v978, 4
    %991 = vst [vmem:[#allocation2 + $0xe0] sm:$0xf0] %v983
    %992 = vst [vmem:[#allocation2 + $0xe8] sm:$0xf0] %v984
    %993 = vst [vmem:[#allocation2 + $0xf0] sm:$0xf0] %v985
    %994 = vst [vmem:[#allocation2 + $0xf8] sm:$0xf0] %v986
    %995 = vst [vmem:[#allocation1] ss:$2 sm:$0xff] %v364
    %s996 = scalar_lea.vmem [#allocation1], 16
    %997 = vst [vmem:[%s996] ss:$2 sm:$0xff] %v365
    %v998 = vld.sshfl [vmem:[#allocation1] sm:$0xff pattern:$0x75316420]
    %v999 = vld.sshfl [vmem:[#allocation1 + $0x8] sm:$0xff pattern:$0x75316420]
    %v1000 = vld.sshfl [vmem:[#allocation1 + $0x10] sm:$0xff pattern:$0x75316420]
    %v1001 = vld.sshfl [vmem:[#allocation1 + $0x18] sm:$0xff pattern:$0x75316420]
    %1006 = vrot.lane.b32.xlu0 %v998, 111
    %v1007 = vpop.permute.xlu0 %1006
    %1008 = vrot.lane.b32.xlu0 %v999, 111
    %v1009 = vpop.permute.xlu0 %1008
    %1010 = vrot.lane.b32.xlu0 %v1000, 111
    %v1011 = vpop.permute.xlu0 %1010
    %1012 = vrot.lane.b32.xlu0 %v1001, 111
    %v1013 = vpop.permute.xlu0 %1012
    %vm1014 = vcmp.lt.s32.totalorder %v388, 111
    %v1015 = vsel %vm1014, %v1011, %v1013
    %v1016 = vsel %vm1014, %v1009, %v1011
    %v1017 = vsel %vm1014, %v1007, %v1009
    %v1018 = vsel %vm1014, %v1013, %v1007
    %s1019 = scalar_lea.vmem [#allocation10], 32
    %v1020 = vld [vmem:[%s1019] ss:$8 sm:$0xf]
    %v1022 = vperm.slane %v1020, 0
    %v1023 = vperm.slane %v1020, 1
    %v1024 = vperm.slane %v1020, 2
    %v1025 = vperm.slane %v1020, 3
    %v1030 = vmul.f32 %v1017, %v1022
    %v1031 = vmul.f32 %v1016, %v1023
    %v1032 = vmul.f32 %v1015, %v1024
    %v1033 = vmul.f32 %v1018, %v1025
    %1034 = vst [vmem:[#allocation2 + $0x100] sm:$0xf] %v1030
    %1035 = vst [vmem:[#allocation2 + $0x108] sm:$0xf] %v1031
    %1036 = vst [vmem:[#allocation2 + $0x110] sm:$0xf] %v1032
    %1037 = vst [vmem:[#allocation2 + $0x118] sm:$0xf] %v1033
    %1038 = vrot.lane.b32.xlu0 %v322, 111
    %v1039 = vpop.permute.xlu0 %1038
    %1040 = vrot.lane.b32.xlu0 %v335, 111
    %v1041 = vpop.permute.xlu0 %1040
    %1042 = vrot.lane.b32.xlu0 %v348, 111
    %v1043 = vpop.permute.xlu0 %1042
    %1044 = vrot.lane.b32.xlu0 %v361, 111
    %v1045 = vpop.permute.xlu0 %1044
    %v1046 = vsel %vm1014, %v1043, %v1045
    %v1047 = vsel %vm1014, %v1041, %v1043
    %v1048 = vsel %vm1014, %v1039, %v1041
    %v1049 = vsel %vm1014, %v1045, %v1039
    %v1050 = vld [vmem:[%s1019] ss:$8 sm:$0xf]
    %v1052 = vperm.slane %v1050, 0
    %v1053 = vperm.slane %v1050, 1
    %v1054 = vperm.slane %v1050, 2
    %v1055 = vperm.slane %v1050, 3
    %v1060 = vmul.f32 %v1048, %v1052
    %v1061 = vmul.f32 %v1047, %v1053
    %v1062 = vmul.f32 %v1046, %v1054
    %v1063 = vmul.f32 %v1049, %v1055
    %v1068 = vrot.slane %v1060, 4
    %v1069 = vrot.slane %v1061, 4
    %v1070 = vrot.slane %v1062, 4
    %v1071 = vrot.slane %v1063, 4
    %1076 = vst [vmem:[#allocation2 + $0x100] sm:$0xf0] %v1068
    %1077 = vst [vmem:[#allocation2 + $0x108] sm:$0xf0] %v1069
    %1078 = vst [vmem:[#allocation2 + $0x110] sm:$0xf0] %v1070
    %1079 = vst [vmem:[#allocation2 + $0x118] sm:$0xf0] %v1071
    %v1080 = vld [vmem:[%s4] sm:$0xf]
    %v1081 = vld [vmem:[#allocation2] sm:$0xff]
    %v1082 = vld [vmem:[#allocation2 + $0x8] sm:$0xff]
    %v1083 = vld [vmem:[#allocation2 + $0x10] sm:$0xff]
    %v1084 = vld [vmem:[#allocation2 + $0x18] sm:$0xff]
    %v1085 = vld [vmem:[#allocation2 + $0x20] sm:$0xff]
    %v1086 = vld [vmem:[#allocation2 + $0x28] sm:$0xff]
    %v1087 = vld [vmem:[#allocation2 + $0x30] sm:$0xff]
    %v1088 = vld [vmem:[#allocation2 + $0x38] sm:$0xff]
    %v1089 = vld [vmem:[#allocation2 + $0x40] sm:$0xff]
    %v1090 = vld [vmem:[#allocation2 + $0x48] sm:$0xff]
    %v1091 = vld [vmem:[#allocation2 + $0x50] sm:$0xff]
    %v1092 = vld [vmem:[#allocation2 + $0x58] sm:$0xff]
    %v1093 = vld [vmem:[#allocation2 + $0x60] sm:$0xff]
    %v1094 = vld [vmem:[#allocation2 + $0x68] sm:$0xff]
    %v1095 = vld [vmem:[#allocation2 + $0x70] sm:$0xff]
    %v1096 = vld [vmem:[#allocation2 + $0x78] sm:$0xff]
    %v1097 = vld [vmem:[#allocation2 + $0x80] sm:$0xff]
    %v1098 = vld [vmem:[#allocation2 + $0x88] sm:$0xff]
    %v1099 = vld [vmem:[#allocation2 + $0x90] sm:$0xff]
    %v1100 = vld [vmem:[#allocation2 + $0x98] sm:$0xff]
    %v1101 = vld [vmem:[#allocation2 + $0xa0] sm:$0xff]
    %v1102 = vld [vmem:[#allocation2 + $0xa8] sm:$0xff]
    %v1103 = vld [vmem:[#allocation2 + $0xb0] sm:$0xff]
    %v1104 = vld [vmem:[#allocation2 + $0xb8] sm:$0xff]
    %v1105 = vld [vmem:[#allocation2 + $0xc0] sm:$0xff]
    %v1106 = vld [vmem:[#allocation2 + $0xc8] sm:$0xff]
    %v1107 = vld [vmem:[#allocation2 + $0xd0] sm:$0xff]
    %v1108 = vld [vmem:[#allocation2 + $0xd8] sm:$0xff]
    %v1109 = vld [vmem:[#allocation2 + $0xe0] sm:$0xff]
    %v1110 = vld [vmem:[#allocation2 + $0xe8] sm:$0xff]
    %v1111 = vld [vmem:[#allocation2 + $0xf0] sm:$0xff]
    %v1112 = vld [vmem:[#allocation2 + $0xf8] sm:$0xff]
    %v1113 = vld [vmem:[#allocation2 + $0x100] sm:$0xff]
    %v1114 = vld [vmem:[#allocation2 + $0x108] sm:$0xff]
    %v1115 = vld [vmem:[#allocation2 + $0x110] sm:$0xff]
    %v1116 = vld [vmem:[#allocation2 + $0x118] sm:$0xff]
    %v1117 = vpack.c.bf16 %v1085, %v1081
    %v1118 = vpack.c.bf16 %v1086, %v1082
    %v1119 = vpack.c.bf16 %v1087, %v1083
    %v1120 = vpack.c.bf16 %v1088, %v1084
    %v1121 = vpack.c.bf16 %v1093, %v1089
    %v1122 = vpack.c.bf16 %v1094, %v1090
    %v1123 = vpack.c.bf16 %v1095, %v1091
    %v1124 = vpack.c.bf16 %v1096, %v1092
    %v1125 = vpack.c.bf16 %v1101, %v1097
    %v1126 = vpack.c.bf16 %v1102, %v1098
    %v1127 = vpack.c.bf16 %v1103, %v1099
    %v1128 = vpack.c.bf16 %v1104, %v1100
    %v1129 = vpack.c.bf16 %v1109, %v1105
    %v1130 = vpack.c.bf16 %v1110, %v1106
    %v1131 = vpack.c.bf16 %v1111, %v1107
    %v1132 = vpack.c.bf16 %v1112, %v1108
    %v1133 = vpack.c.bf16 %v1113, %v1113
    %v1134 = vpack.c.bf16 %v1114, %v1114
    %v1135 = vpack.c.bf16 %v1115, %v1115
    %v1136 = vpack.c.bf16 %v1116, %v1116
    %v1137 = vld [vmem:[%s7 + $0x8] sm:$0xff]
    %1139 = vset.pattern.permute.xlu0 0
    %1140 = vperm.xlu0 %1139, %v1137
    %v1141 = vpop.permute.xlu0 %1140
    %vm1143 = vcmask 588800
    %v1145 = vsel %vm1143, %v1080, 0
    %v1148 = vsel %vm96, %v1133, 0
    %v1151 = vsel %vm96, %v1134, 0
    %v1154 = vsel %vm96, %v1135, 0
    %v1157 = vsel %vm96, %v1136, 0
    %1159 = vmatpush.bf16.msra.mxu0 0
    %1160 = vmatpush.bf16.msra.mxu0 0
    %1161 = vmatpush.bf16.msra.mxu0 0
    %1162 = vmatpush.bf16.msra.mxu0 %v1148
    %1163 = vmatpush.bf16.msra.mxu0 %v1129
    %1164 = vmatpush.bf16.msra.mxu0 %v1125
    %1165 = vmatpush.bf16.msra.mxu0 %v1121
    %1166 = vmatpush.bf16.msra.mxu0 %v1117
    %1167 = vmatmul.bf16.gmra.mxu0 %v1145
    %v1168 = vpop.f32.mrf.mxu0
    %v1169 = vadd.f32 %v1141, %v1168
    %v1170 = vpop.f32.mrf.mxu0
    %1171 = vdwg.mxu0
    %1172 = vmatpush.bf16.msra.mxu0 0
    %1173 = vmatpush.bf16.msra.mxu0 0
    %1174 = vmatpush.bf16.msra.mxu0 0
    %1175 = vmatpush.bf16.msra.mxu0 %v1151
    %1176 = vmatpush.bf16.msra.mxu0 %v1130
    %1177 = vmatpush.bf16.msra.mxu0 %v1126
    %1178 = vmatpush.bf16.msra.mxu0 %v1122
    %1179 = vmatpush.bf16.msra.mxu0 %v1118
    %1180 = vmatmul.bf16.gmra.mxu0 %v1145
    %v1181 = vpop.f32.mrf.mxu0
    %v1182 = vadd.f32 %v1141, %v1181
    %v1183 = vpop.f32.mrf.mxu0
    %1184 = vdwg.mxu0
    %1185 = vmatpush.bf16.msra.mxu0 0
    %1186 = vmatpush.bf16.msra.mxu0 0
    %1187 = vmatpush.bf16.msra.mxu0 0
    %1188 = vmatpush.bf16.msra.mxu0 %v1154
    %1189 = vmatpush.bf16.msra.mxu0 %v1131
    %1190 = vmatpush.bf16.msra.mxu0 %v1127
    %1191 = vmatpush.bf16.msra.mxu0 %v1123
    %1192 = vmatpush.bf16.msra.mxu0 %v1119
    %1193 = vmatmul.bf16.gmra.mxu0 %v1145
    %v1194 = vpop.f32.mrf.mxu0
    %v1195 = vadd.f32 %v1141, %v1194
    %v1196 = vpop.f32.mrf.mxu0
    %1197 = vdwg.mxu0
    %1198 = vmatpush.bf16.msra.mxu0 0
    %1199 = vmatpush.bf16.msra.mxu0 0
    %1200 = vmatpush.bf16.msra.mxu0 0
    %1201 = vmatpush.bf16.msra.mxu0 %v1157
    %1202 = vmatpush.bf16.msra.mxu0 %v1132
    %1203 = vmatpush.bf16.msra.mxu0 %v1128
    %1204 = vmatpush.bf16.msra.mxu0 %v1124
    %1205 = vmatpush.bf16.msra.mxu0 %v1120
    %1206 = vmatmul.bf16.gmra.mxu0 %v1145
    %v1207 = vpop.f32.mrf.mxu0
    %v1208 = vadd.f32 %v1141, %v1207
    %v1209 = vpop.f32.mrf.mxu0
    %1210 = vdwg.mxu0
    %vm1211 = vcmp.ge.f32.partialorder %v1169, 0.0
    %vm1212 = vcmp.ge.f32.partialorder %v1182, 0.0
    %vm1213 = vcmp.ge.f32.partialorder %v1195, 0.0
    %vm1214 = vcmp.ge.f32.partialorder %v1208, 0.0
    %v1215 = vmul.f32 %v1169, 0.01
    %v1216 = vmul.f32 %v1182, 0.01
    %v1217 = vmul.f32 %v1195, 0.01
    %v1218 = vmul.f32 %v1208, 0.01
    %v1219 = vsel %vm1211, %v1169, %v1215
    %v1220 = vsel %vm1212, %v1182, %v1216
    %v1221 = vsel %vm1213, %v1195, %v1217
    %v1222 = vsel %vm1214, %v1208, %v1218
    %1223 = vrot.lane.b32.xlu0 %v1219, 17
    %v1224 = vpop.permute.xlu0 %1223
    %1225 = vrot.lane.b32.xlu0 %v1220, 17
    %v1226 = vpop.permute.xlu0 %1225
    %1227 = vrot.lane.b32.xlu0 %v1221, 17
    %v1228 = vpop.permute.xlu0 %1227
    %1229 = vrot.lane.b32.xlu0 %v1222, 17
    %v1230 = vpop.permute.xlu0 %1229
    %v1231 = vsel %vm389, %v1228, %v1230
    %v1232 = vsel %vm389, %v1226, %v1228
    %v1233 = vsel %vm389, %v1224, %v1226
    %v1234 = vsel %vm389, %v1230, %v1224
    %v1235 = vld [vmem:[#allocation10] ss:$8 sm:$0xf]
    %v1237 = vperm.slane %v1235, 0
    %v1238 = vperm.slane %v1235, 1
    %v1239 = vperm.slane %v1235, 2
    %v1240 = vperm.slane %v1235, 3
    %v1245 = vmul.f32 %v1234, %v1237
    %v1246 = vmul.f32 %v1233, %v1238
    %v1247 = vmul.f32 %v1232, %v1239
    %v1248 = vmul.f32 %v1231, %v1240
    %1249 = vst [vmem:[#allocation3] sm:$0xff] %v1245
    %1250 = vst [vmem:[#allocation3 + $0x8] sm:$0xff] %v1246
    %1251 = vst [vmem:[#allocation3 + $0x10] sm:$0xff] %v1247
    %1252 = vst [vmem:[#allocation3 + $0x18] sm:$0xff] %v1248
    %1253 = vrot.lane.b32.xlu0 %v1219, 16
    %v1254 = vpop.permute.xlu0 %1253
    %1255 = vrot.lane.b32.xlu0 %v1220, 16
    %v1256 = vpop.permute.xlu0 %1255
    %1257 = vrot.lane.b32.xlu0 %v1221, 16
    %v1258 = vpop.permute.xlu0 %1257
    %1259 = vrot.lane.b32.xlu0 %v1222, 16
    %v1260 = vpop.permute.xlu0 %1259
    %v1261 = vsel %vm473, %v1258, %v1260
    %v1262 = vsel %vm473, %v1256, %v1258
    %v1263 = vsel %vm473, %v1254, %v1256
    %v1264 = vsel %vm473, %v1260, %v1254
    %v1265 = vld [vmem:[%s478] ss:$8 sm:$0xf]
    %v1267 = vperm.slane %v1265, 0
    %v1268 = vperm.slane %v1265, 1
    %v1269 = vperm.slane %v1265, 2
    %v1270 = vperm.slane %v1265, 3
    %v1275 = vmul.f32 %v1264, %v1267
    %v1276 = vmul.f32 %v1263, %v1268
    %v1277 = vmul.f32 %v1262, %v1269
    %v1278 = vmul.f32 %v1261, %v1270
    %1279 = vst [vmem:[#allocation3 + $0x20] sm:$0xff] %v1275
    %1280 = vst [vmem:[#allocation3 + $0x28] sm:$0xff] %v1276
    %1281 = vst [vmem:[#allocation3 + $0x30] sm:$0xff] %v1277
    %1282 = vst [vmem:[#allocation3 + $0x38] sm:$0xff] %v1278
    %1283 = vrot.lane.b32.xlu0 %v1219, 15
    %v1284 = vpop.permute.xlu0 %1283
    %1285 = vrot.lane.b32.xlu0 %v1220, 15
    %v1286 = vpop.permute.xlu0 %1285
    %1287 = vrot.lane.b32.xlu0 %v1221, 15
    %v1288 = vpop.permute.xlu0 %1287
    %1289 = vrot.lane.b32.xlu0 %v1222, 15
    %v1290 = vpop.permute.xlu0 %1289
    %v1291 = vsel %vm558, %v1288, %v1290
    %v1292 = vsel %vm558, %v1286, %v1288
    %v1293 = vsel %vm558, %v1284, %v1286
    %v1294 = vsel %vm558, %v1290, %v1284
    %v1295 = vld [vmem:[%s563] ss:$8 sm:$0xf]
    %v1297 = vperm.slane %v1295, 0
    %v1298 = vperm.slane %v1295, 1
    %v1299 = vperm.slane %v1295, 2
    %v1300 = vperm.slane %v1295, 3
    %v1305 = vmul.f32 %v1294, %v1297
    %v1306 = vmul.f32 %v1293, %v1298
    %v1307 = vmul.f32 %v1292, %v1299
    %v1308 = vmul.f32 %v1291, %v1300
    %1309 = vst [vmem:[#allocation3 + $0x40] sm:$0xff] %v1305
    %1310 = vst [vmem:[#allocation3 + $0x48] sm:$0xff] %v1306
    %1311 = vst [vmem:[#allocation3 + $0x50] sm:$0xff] %v1307
    %1312 = vst [vmem:[#allocation3 + $0x58] sm:$0xff] %v1308
    %1313 = vrot.lane.b32.xlu0 %v1219, 1
    %v1314 = vpop.permute.xlu0 %1313
    %1315 = vrot.lane.b32.xlu0 %v1220, 1
    %v1316 = vpop.permute.xlu0 %1315
    %1317 = vrot.lane.b32.xlu0 %v1221, 1
    %v1318 = vpop.permute.xlu0 %1317
    %1319 = vrot.lane.b32.xlu0 %v1222, 1
    %v1320 = vpop.permute.xlu0 %1319
    %v1321 = vsel %vm643, %v1318, %v1320
    %v1322 = vsel %vm643, %v1316, %v1318
    %v1323 = vsel %vm643, %v1314, %v1316
    %v1324 = vsel %vm643, %v1320, %v1314
    %v1325 = vld [vmem:[%s648] ss:$8 sm:$0xf]
    %v1327 = vperm.slane %v1325, 0
    %v1328 = vperm.slane %v1325, 1
    %v1329 = vperm.slane %v1325, 2
    %v1330 = vperm.slane %v1325, 3
    %v1335 = vmul.f32 %v1324, %v1327
    %v1336 = vmul.f32 %v1323, %v1328
    %v1337 = vmul.f32 %v1322, %v1329
    %v1338 = vmul.f32 %v1321, %v1330
    %1339 = vst [vmem:[#allocation3 + $0x60] sm:$0xff] %v1335
    %1340 = vst [vmem:[#allocation3 + $0x68] sm:$0xff] %v1336
    %1341 = vst [vmem:[#allocation3 + $0x70] sm:$0xff] %v1337
    %1342 = vst [vmem:[#allocation3 + $0x78] sm:$0xff] %v1338
    %1343 = vst [vmem:[#allocation3 + $0x80] sm:$0xff] %v1219
    %1344 = vst [vmem:[#allocation3 + $0x88] sm:$0xff] %v1220
    %1345 = vst [vmem:[#allocation3 + $0x90] sm:$0xff] %v1221
    %1346 = vst [vmem:[#allocation3 + $0x98] sm:$0xff] %v1222
    %1347 = vrot.lane.b32.xlu0 %v1219, 127
    %v1348 = vpop.permute.xlu0 %1347
    %1349 = vrot.lane.b32.xlu0 %v1220, 127
    %v1350 = vpop.permute.xlu0 %1349
    %1351 = vrot.lane.b32.xlu0 %v1221, 127
    %v1352 = vpop.permute.xlu0 %1351
    %1353 = vrot.lane.b32.xlu0 %v1222, 127
    %v1354 = vpop.permute.xlu0 %1353
    %v1355 = vsel %vm759, %v1352, %v1354
    %v1356 = vsel %vm759, %v1350, %v1352
    %v1357 = vsel %vm759, %v1348, %v1350
    %v1358 = vsel %vm759, %v1354, %v1348
    %v1359 = vld [vmem:[%s764] ss:$8 sm:$0xf]
    %v1361 = vperm.slane %v1359, 0
    %v1362 = vperm.slane %v1359, 1
    %v1363 = vperm.slane %v1359, 2
    %v1364 = vperm.slane %v1359, 3
    %v1369 = vmul.f32 %v1357, %v1361
    %v1370 = vmul.f32 %v1356, %v1362
    %v1371 = vmul.f32 %v1355, %v1363
    %v1372 = vmul.f32 %v1358, %v1364
    %1373 = vst [vmem:[#allocation3 + $0xa0] sm:$0xff] %v1369
    %1374 = vst [vmem:[#allocation3 + $0xa8] sm:$0xff] %v1370
    %1375 = vst [vmem:[#allocation3 + $0xb0] sm:$0xff] %v1371
    %1376 = vst [vmem:[#allocation3 + $0xb8] sm:$0xff] %v1372
    %1377 = vrot.lane.b32.xlu0 %v1219, 113
    %v1378 = vpop.permute.xlu0 %1377
    %1379 = vrot.lane.b32.xlu0 %v1220, 113
    %v1380 = vpop.permute.xlu0 %1379
    %1381 = vrot.lane.b32.xlu0 %v1221, 113
    %v1382 = vpop.permute.xlu0 %1381
    %1383 = vrot.lane.b32.xlu0 %v1222, 113
    %v1384 = vpop.permute.xlu0 %1383
    %v1385 = vsel %vm844, %v1382, %v1384
    %v1386 = vsel %vm844, %v1380, %v1382
    %v1387 = vsel %vm844, %v1378, %v1380
    %v1388 = vsel %vm844, %v1384, %v1378
    %v1389 = vld [vmem:[%s849] ss:$8 sm:$0xf]
    %v1391 = vperm.slane %v1389, 0
    %v1392 = vperm.slane %v1389, 1
    %v1393 = vperm.slane %v1389, 2
    %v1394 = vperm.slane %v1389, 3
    %v1399 = vmul.f32 %v1387, %v1391
    %v1400 = vmul.f32 %v1386, %v1392
    %v1401 = vmul.f32 %v1385, %v1393
    %v1402 = vmul.f32 %v1388, %v1394
    %1403 = vst [vmem:[#allocation3 + $0xc0] sm:$0xff] %v1399
    %1404 = vst [vmem:[#allocation3 + $0xc8] sm:$0xff] %v1400
    %1405 = vst [vmem:[#allocation3 + $0xd0] sm:$0xff] %v1401
    %1406 = vst [vmem:[#allocation3 + $0xd8] sm:$0xff] %v1402
    %1407 = vrot.lane.b32.xlu0 %v1219, 112
    %v1408 = vpop.permute.xlu0 %1407
    %1409 = vrot.lane.b32.xlu0 %v1220, 112
    %v1410 = vpop.permute.xlu0 %1409
    %1411 = vrot.lane.b32.xlu0 %v1221, 112
    %v1412 = vpop.permute.xlu0 %1411
    %1413 = vrot.lane.b32.xlu0 %v1222, 112
    %v1414 = vpop.permute.xlu0 %1413
    %v1415 = vsel %vm929, %v1412, %v1414
    %v1416 = vsel %vm929, %v1410, %v1412
    %v1417 = vsel %vm929, %v1408, %v1410
    %v1418 = vsel %vm929, %v1414, %v1408
    %v1419 = vld [vmem:[%s934] ss:$8 sm:$0xf]
    %v1421 = vperm.slane %v1419, 0
    %v1422 = vperm.slane %v1419, 1
    %v1423 = vperm.slane %v1419, 2
    %v1424 = vperm.slane %v1419, 3
    %v1429 = vmul.f32 %v1417, %v1421
    %v1430 = vmul.f32 %v1416, %v1422
    %v1431 = vmul.f32 %v1415, %v1423
    %v1432 = vmul.f32 %v1418, %v1424
    %1433 = vst [vmem:[#allocation3 + $0xe0] sm:$0xff] %v1429
    %1434 = vst [vmem:[#allocation3 + $0xe8] sm:$0xff] %v1430
    %1435 = vst [vmem:[#allocation3 + $0xf0] sm:$0xff] %v1431
    %1436 = vst [vmem:[#allocation3 + $0xf8] sm:$0xff] %v1432
    %1437 = vrot.lane.b32.xlu0 %v1219, 111
    %v1438 = vpop.permute.xlu0 %1437
    %1439 = vrot.lane.b32.xlu0 %v1220, 111
    %v1440 = vpop.permute.xlu0 %1439
    %1441 = vrot.lane.b32.xlu0 %v1221, 111
    %v1442 = vpop.permute.xlu0 %1441
    %1443 = vrot.lane.b32.xlu0 %v1222, 111
    %v1444 = vpop.permute.xlu0 %1443
    %v1445 = vsel %vm1014, %v1442, %v1444
    %v1446 = vsel %vm1014, %v1440, %v1442
    %v1447 = vsel %vm1014, %v1438, %v1440
    %v1448 = vsel %vm1014, %v1444, %v1438
    %v1449 = vld [vmem:[%s1019] ss:$8 sm:$0xf]
    %v1451 = vperm.slane %v1449, 0
    %v1452 = vperm.slane %v1449, 1
    %v1453 = vperm.slane %v1449, 2
    %v1454 = vperm.slane %v1449, 3
    %v1459 = vmul.f32 %v1447, %v1451
    %v1460 = vmul.f32 %v1446, %v1452
    %v1461 = vmul.f32 %v1445, %v1453
    %v1462 = vmul.f32 %v1448, %v1454
    %1463 = vst [vmem:[#allocation3 + $0x100] sm:$0xff] %v1459
    %1464 = vst [vmem:[#allocation3 + $0x108] sm:$0xff] %v1460
    %1465 = vst [vmem:[#allocation3 + $0x110] sm:$0xff] %v1461
    %1466 = vst [vmem:[#allocation3 + $0x118] sm:$0xff] %v1462
    %v1467 = vld [vmem:[#allocation9] sm:$0xf]
    %v1468 = vld [vmem:[#allocation3] sm:$0xff]
    %v1469 = vld [vmem:[#allocation3 + $0x8] sm:$0xff]
    %v1470 = vld [vmem:[#allocation3 + $0x10] sm:$0xff]
    %v1471 = vld [vmem:[#allocation3 + $0x18] sm:$0xff]
    %v1472 = vld [vmem:[#allocation3 + $0x20] sm:$0xff]
    %v1473 = vld [vmem:[#allocation3 + $0x28] sm:$0xff]
    %v1474 = vld [vmem:[#allocation3 + $0x30] sm:$0xff]
    %v1475 = vld [vmem:[#allocation3 + $0x38] sm:$0xff]
    %v1476 = vld [vmem:[#allocation3 + $0x40] sm:$0xff]
    %v1477 = vld [vmem:[#allocation3 + $0x48] sm:$0xff]
    %v1478 = vld [vmem:[#allocation3 + $0x50] sm:$0xff]
    %v1479 = vld [vmem:[#allocation3 + $0x58] sm:$0xff]
    %v1480 = vld [vmem:[#allocation3 + $0x60] sm:$0xff]
    %v1481 = vld [vmem:[#allocation3 + $0x68] sm:$0xff]
    %v1482 = vld [vmem:[#allocation3 + $0x70] sm:$0xff]
    %v1483 = vld [vmem:[#allocation3 + $0x78] sm:$0xff]
    %v1484 = vld [vmem:[#allocation3 + $0x80] sm:$0xff]
    %v1485 = vld [vmem:[#allocation3 + $0x88] sm:$0xff]
    %v1486 = vld [vmem:[#allocation3 + $0x90] sm:$0xff]
    %v1487 = vld [vmem:[#allocation3 + $0x98] sm:$0xff]
    %v1488 = vld [vmem:[#allocation3 + $0xa0] sm:$0xff]
    %v1489 = vld [vmem:[#allocation3 + $0xa8] sm:$0xff]
    %v1490 = vld [vmem:[#allocation3 + $0xb0] sm:$0xff]
    %v1491 = vld [vmem:[#allocation3 + $0xb8] sm:$0xff]
    %v1492 = vld [vmem:[#allocation3 + $0xc0] sm:$0xff]
    %v1493 = vld [vmem:[#allocation3 + $0xc8] sm:$0xff]
    %v1494 = vld [vmem:[#allocation3 + $0xd0] sm:$0xff]
    %v1495 = vld [vmem:[#allocation3 + $0xd8] sm:$0xff]
    %v1496 = vld [vmem:[#allocation3 + $0xe0] sm:$0xff]
    %v1497 = vld [vmem:[#allocation3 + $0xe8] sm:$0xff]
    %v1498 = vld [vmem:[#allocation3 + $0xf0] sm:$0xff]
    %v1499 = vld [vmem:[#allocation3 + $0xf8] sm:$0xff]
    %v1500 = vld [vmem:[#allocation3 + $0x100] sm:$0xff]
    %v1501 = vld [vmem:[#allocation3 + $0x108] sm:$0xff]
    %v1502 = vld [vmem:[#allocation3 + $0x110] sm:$0xff]
    %v1503 = vld [vmem:[#allocation3 + $0x118] sm:$0xff]
    %v1504 = vpack.c.bf16 %v1472, %v1468
    %v1505 = vpack.c.bf16 %v1473, %v1469
    %v1506 = vpack.c.bf16 %v1474, %v1470
    %v1507 = vpack.c.bf16 %v1475, %v1471
    %v1508 = vpack.c.bf16 %v1480, %v1476
    %v1509 = vpack.c.bf16 %v1481, %v1477
    %v1510 = vpack.c.bf16 %v1482, %v1478
    %v1511 = vpack.c.bf16 %v1483, %v1479
    %v1512 = vpack.c.bf16 %v1488, %v1484
    %v1513 = vpack.c.bf16 %v1489, %v1485
    %v1514 = vpack.c.bf16 %v1490, %v1486
    %v1515 = vpack.c.bf16 %v1491, %v1487
    %v1516 = vpack.c.bf16 %v1496, %v1492
    %v1517 = vpack.c.bf16 %v1497, %v1493
    %v1518 = vpack.c.bf16 %v1498, %v1494
    %v1519 = vpack.c.bf16 %v1499, %v1495
    %v1520 = vpack.c.bf16 %v1500, %v1500
    %v1521 = vpack.c.bf16 %v1501, %v1501
    %v1522 = vpack.c.bf16 %v1502, %v1502
    %v1523 = vpack.c.bf16 %v1503, %v1503
    %v1524 = vld [vmem:[%s7 + $0x10] sm:$0xff]
    %1526 = vset.pattern.permute.xlu0 0
    %1527 = vperm.xlu0 %1526, %v1524
    %v1528 = vpop.permute.xlu0 %1527
    %v1531 = vsel %vm1143, %v1467, 0
    %v1534 = vsel %vm96, %v1520, 0
    %v1537 = vsel %vm96, %v1521, 0
    %v1540 = vsel %vm96, %v1522, 0
    %v1543 = vsel %vm96, %v1523, 0
    %1545 = vmatpush.bf16.msra.mxu0 0
    %1546 = vmatpush.bf16.msra.mxu0 0
    %1547 = vmatpush.bf16.msra.mxu0 0
    %1548 = vmatpush.bf16.msra.mxu0 %v1534
    %1549 = vmatpush.bf16.msra.mxu0 %v1516
    %1550 = vmatpush.bf16.msra.mxu0 %v1512
    %1551 = vmatpush.bf16.msra.mxu0 %v1508
    %1552 = vmatpush.bf16.msra.mxu0 %v1504
    %1553 = vmatmul.bf16.gmra.mxu0 %v1531
    %v1554 = vpop.f32.mrf.mxu0
    %v1555 = vadd.f32 %v1528, %v1554
    %v1556 = vpop.f32.mrf.mxu0
    %1557 = vdwg.mxu0
    %1558 = vmatpush.bf16.msra.mxu0 0
    %1559 = vmatpush.bf16.msra.mxu0 0
    %1560 = vmatpush.bf16.msra.mxu0 0
    %1561 = vmatpush.bf16.msra.mxu0 %v1537
    %1562 = vmatpush.bf16.msra.mxu0 %v1517
    %1563 = vmatpush.bf16.msra.mxu0 %v1513
    %1564 = vmatpush.bf16.msra.mxu0 %v1509
    %1565 = vmatpush.bf16.msra.mxu0 %v1505
    %1566 = vmatmul.bf16.gmra.mxu0 %v1531
    %v1567 = vpop.f32.mrf.mxu0
    %v1568 = vadd.f32 %v1528, %v1567
    %v1569 = vpop.f32.mrf.mxu0
    %1570 = vdwg.mxu0
    %1571 = vmatpush.bf16.msra.mxu0 0
    %1572 = vmatpush.bf16.msra.mxu0 0
    %1573 = vmatpush.bf16.msra.mxu0 0
    %1574 = vmatpush.bf16.msra.mxu0 %v1540
    %1575 = vmatpush.bf16.msra.mxu0 %v1518
    %1576 = vmatpush.bf16.msra.mxu0 %v1514
    %1577 = vmatpush.bf16.msra.mxu0 %v1510
    %1578 = vmatpush.bf16.msra.mxu0 %v1506
    %1579 = vmatmul.bf16.gmra.mxu0 %v1531
    %v1580 = vpop.f32.mrf.mxu0
    %v1581 = vadd.f32 %v1528, %v1580
    %v1582 = vpop.f32.mrf.mxu0
    %1583 = vdwg.mxu0
    %1584 = vmatpush.bf16.msra.mxu0 0
    %1585 = vmatpush.bf16.msra.mxu0 0
    %1586 = vmatpush.bf16.msra.mxu0 0
    %1587 = vmatpush.bf16.msra.mxu0 %v1543
    %1588 = vmatpush.bf16.msra.mxu0 %v1519
    %1589 = vmatpush.bf16.msra.mxu0 %v1515
    %1590 = vmatpush.bf16.msra.mxu0 %v1511
    %1591 = vmatpush.bf16.msra.mxu0 %v1507
    %1592 = vmatmul.bf16.gmra.mxu0 %v1531
    %v1593 = vpop.f32.mrf.mxu0
    %v1594 = vadd.f32 %v1528, %v1593
    %v1595 = vpop.f32.mrf.mxu0
    %1596 = vdwg.mxu0
    %vm1597 = vcmp.ge.f32.partialorder %v1555, 0.0
    %vm1598 = vcmp.ge.f32.partialorder %v1568, 0.0
    %vm1599 = vcmp.ge.f32.partialorder %v1581, 0.0
    %vm1600 = vcmp.ge.f32.partialorder %v1594, 0.0
    %v1601 = vmul.f32 %v1555, 0.01
    %v1602 = vmul.f32 %v1568, 0.01
    %v1603 = vmul.f32 %v1581, 0.01
    %v1604 = vmul.f32 %v1594, 0.01
    %v1605 = vsel %vm1597, %v1555, %v1601
    %v1606 = vsel %vm1598, %v1568, %v1602
    %v1607 = vsel %vm1599, %v1581, %v1603
    %v1608 = vsel %vm1600, %v1594, %v1604
    %1609 = vst [vmem:[#allocation12] sm:$0xff] %v1605
    %1610 = vst [vmem:[#allocation12 + $0x8] sm:$0xff] %v1606
    %1611 = vst [vmem:[#allocation12 + $0x10] sm:$0xff] %v1607
    %1612 = vst [vmem:[#allocation12 + $0x18] sm:$0xff] %v1608
    // Predicated region
    $region50: #{tpu_custom_call.1} parent=1 // pred_check
      _
    $region51: #{tpu_custom_call.1} parent=1 // pred_check_branch
      %1614 = sbr.rel (0) target = $region53
    $region52: #{tpu_custom_call.1} parent=1 // pred_region
      %1616 = vsyncadd [#allocation6], 0
      %s1618 = sshll.u32 [#allocation12], 4
      %s1619 = int_to_ptr.vmem [resolvable:$true] %s1618
      %s1620 = sshll.u32 %s8, 4
      %s1621 = int_to_ptr.hbm [resolvable:$true] %s1620
      %1623 = dma.vmem_to_hbm [thread:$0]  %s1619, 512, %s1621, [#allocation6]
    $region53: #{tpu_custom_call.1} parent=1 // pred_fallthru
      _
    // Predicated region
    $region54: #{tpu_custom_call.1} parent=1 // pred_check
      _
    $region55: #{tpu_custom_call.1} parent=1 // pred_check_branch
      %1625 = sbr.rel (0) target = $region57
    $region56: #{tpu_custom_call.1} parent=1 // pred_region
      %1627 = dma.done [#allocation6], 512
    $region57: #{tpu_custom_call.1} parent=1 // pred_fallthru
      _
    %1628 = vsyncpa [#allocation5], 1
    %1629 = vsyncpa [#allocation8], 1
    %1630 = vsyncpa [#allocation11], 1
    %1631 = vsyncpa [#allocation6], 1

</llo_original>
